<compile_context>
chip_gen: v5e
topology: v5e:2x2
jax: 0.10.0
libtpu: 0.0.40
codegen_flags: <defaults>
</compile_context>

<pallas_src>
from contextlib import contextmanager

import jax
import jax.numpy as jnp
from jax.experimental import pallas as pl
from jax.experimental.pallas import tpu as pltpu


# ------------------------------ helpers --------------------------------------

def _round_up(x, m):
    return ((x + m - 1) // m) * m


_VMEM_BUDGET = 40 * 1024 * 1024          # v7x-safe working-set budget
_VMEM_LIMIT = 48 * 1024 * 1024           # below v7x 64 MiB physical VMEM/TC


# ----------------------------- Pallas kernels --------------------------------

def _linear_relu_resident_kernel(x_ref, w_ref, b_ref, o_ref):
    """y = relu(x @ W + b) for one (tm, tn) output block, full-K panel.

    Grid = (N tiles, M tiles) with M innermost: the (Kp, tn) W panel and the
    bias block have a constant block index across consecutive M steps, so they
    are DMA'd once per N tile (i.e. W streamed exactly once overall).
    x is f32 in VMEM and cast to bf16 here (no separate XLA pad/cast pass).
    """
    x = x_ref[...].astype(jnp.bfloat16)                       # (tm, Kp)
    y = jnp.dot(x, w_ref[...], preferred_element_type=jnp.float32)  # (tm, tn) f32
    y = y + b_ref[...]                                        # bias (1, tn) bcast
    o_ref[...] = jnp.maximum(y, 0.0).astype(o_ref.dtype)


def _linear_relu_ktiled_kernel(x_ref, w_ref, b_ref, o_ref, acc_ref):
    """Fallback for very large K*N (W panel does not fit VMEM): K-tiled
    reduction with an f32 VMEM accumulator.  Grid = (M, N, K), K innermost."""
    k = pl.program_id(2)

    @pl.when(k == 0)
    def _():
        acc_ref[...] = jnp.zeros_like(acc_ref)

    acc_ref[...] += jnp.dot(x_ref[...].astype(jnp.bfloat16), w_ref[...],
                            preferred_element_type=jnp.float32)

    @pl.when(k == pl.num_programs(2) - 1)
    def _():
        y = acc_ref[...] + b_ref[...]
        o_ref[...] = jnp.maximum(y, 0.0).astype(o_ref.dtype)


def linear_relu_pallas(x2d, w, b):
    """y = relu(x2d @ w + b).

    x2d: [M, K] f32 activations (cast to bf16 inside the kernel).
    w:   [K, N] bf16 weights (already transposed vs. nn.Linear, cast at init).
    b:   [N]    f32 bias.
    """
    M, K = x2d.shape
    Kw, N = w.shape
    assert K == Kw and b.shape == (N,)
    assert w.dtype == jnp.bfloat16
    out_dtype = x2d.dtype
    out_bytes = out_dtype.itemsize
    x_bytes = x2d.dtype.itemsize

    # ---- tile selection ------------------------------------------------------
    # N tile: lane-dense multiple of 128, up to 512.
    tn = min(512, _round_up(N, 128))
    Np = _round_up(N, tn)
    # M tile: multiple of 16 (bf16 sublane packing); keep >= 2 M tiles when M
    # is large enough so the "parallel" M axis can megacore-shard on v7x.
    if M >= 1024:
        tm = 512
    elif M >= 512:
        tm = 256
    else:
        tm = _round_up(M, 16)
    Mp = _round_up(M, tm)

    Kp128 = _round_up(K, 128)

    # Weight-resident path if the double-buffered working set fits the budget.
    resident_bytes = (2 * tm * Kp128 * x_bytes      # x blocks (f32, dbl-buffered)
                      + 2 * Kp128 * tn * 2          # W panel (bf16)
                      + 2 * tn * 4                  # bias
                      + 2 * tm * tn * out_bytes)    # output blocks
    use_resident = resident_bytes <= _VMEM_BUDGET

    tk = Kp128 if use_resident else min(2048, Kp128)
    Kp = _round_up(K, tk)

    # ---- padding (skipped entirely when shapes are already aligned) ----------
    x_p = x2d if (Mp == M and Kp == K) else jnp.pad(x2d, ((0, Mp - M), (0, Kp - K)))
    w_p = w if (Kp == K and Np == N) else jnp.pad(w, ((0, Kp - K), (0, Np - N)))
    b_p = (b if Np == N else jnp.pad(b, (0, Np - N))).reshape(1, Np)

    ni, nj, nk = Mp // tm, Np // tn, Kp // tk

    if use_resident:
        # HBM traffic: x streamed once per N tile, W and out exactly once.
        cost = pl.CostEstimate(
            flops=2 * Mp * Kp * Np,
            transcendentals=0,
            bytes_accessed=(Mp * Kp * x_bytes * nj
                            + Kp * Np * 2 + Np * 4
                            + Mp * Np * out_bytes),
        )
        out = pl.pallas_call(
            _linear_relu_resident_kernel,
            out_shape=jax.ShapeDtypeStruct((Mp, Np), out_dtype),
            grid_spec=pltpu.PrefetchScalarGridSpec(
                num_scalar_prefetch=0,
                grid=(nj, ni),                       # N outer, M inner
                in_specs=[
                    # x block walks M only (re-streamed only when j changes).
                    pl.BlockSpec((tm, Kp), lambda j, i: (i, 0)),
                    # Full-K W panel: constant across the inner M axis -> one DMA.
                    pl.BlockSpec((Kp, tn), lambda j, i: (0, j)),
                    # Bias panel: constant across the inner M axis.
                    pl.BlockSpec((1, tn), lambda j, i: (0, j)),
                ],
                out_specs=pl.BlockSpec((tm, tn), lambda j, i: (i, j)),
            ),
            compiler_params=pltpu.CompilerParams(
                dimension_semantics=("parallel", "parallel"),
                vmem_limit_bytes=_VMEM_LIMIT,
            ),
            cost_estimate=cost,
        )(x_p, w_p, b_p)
    else:
        # K-tiled fallback (very large H only): accumulate in f32 VMEM scratch.
        cost = pl.CostEstimate(
            flops=2 * Mp * Kp * Np,
            transcendentals=0,
            bytes_accessed=(Mp * Kp * x_bytes * nj     # x re-streamed per N tile
                            + Kp * Np * 2 * ni         # W re-streamed per M tile
                            + Np * 4 * ni
                            + Mp * Np * out_bytes),
        )
        out = pl.pallas_call(
            _linear_relu_ktiled_kernel,
            out_shape=jax.ShapeDtypeStruct((Mp, Np), out_dtype),
            grid_spec=pltpu.PrefetchScalarGridSpec(
                num_scalar_prefetch=0,
                grid=(ni, nj, nk),
                in_specs=[
                    pl.BlockSpec((tm, tk), lambda i, j, k: (i, k)),
                    pl.BlockSpec((tk, tn), lambda i, j, k: (k, j)),
                    pl.BlockSpec((1, tn), lambda i, j, k: (0, j)),
                ],
                out_specs=pl.BlockSpec((tm, tn), lambda i, j, k: (i, j)),
                scratch_shapes=[pltpu.VMEM((tm, tn), jnp.float32)],
            ),
            compiler_params=pltpu.CompilerParams(
                dimension_semantics=("parallel", "parallel", "arbitrary"),
                vmem_limit_bytes=_VMEM_LIMIT,
            ),
            cost_estimate=cost,
        )(x_p, w_p, b_p)

    if Mp == M and Np == N:
        return out
    return out[:M, :N]


# --------------------------- Inner module (JAX) -------------------------------

class InnerLinearReLU:
    """Representative wrapped module: Linear(H, H) + ReLU, hot path in Pallas."""

    def __init__(self, hidden, key):
        k_w, k_b = jax.random.split(key)
        scale = 1.0 / jnp.sqrt(jnp.float32(hidden))
        # Weight stored as [H_in, H_out] (transposed vs. PyTorch nn.Linear) and
        # cast to bf16 ONCE at init (no per-call cast / HBM round trip).
        self.w = (jax.random.uniform(k_w, (hidden, hidden), jnp.float32,
                                     minval=-1.0, maxval=1.0) * scale
                  ).astype(jnp.bfloat16)
        self.b = (jax.random.uniform(k_b, (hidden,), jnp.float32,
                                     minval=-1.0, maxval=1.0) * scale
                  ).astype(jnp.float32)

    def __call__(self, x):
        # x: [B, S, H] -> [B, S, H]; flatten to a lane-dense [B*S, H] slab.
        B, S, H = x.shape
        y2d = linear_relu_pallas(x.reshape(B * S, H), self.w, self.b)
        return y2d.reshape(B, S, H)


# ------------------------------ The wrapper -----------------------------------

class DummyDDPWrapper:
    """Exact semantics of the PyTorch DummyDDPWrapper: pure delegation."""

    def __init__(self, module):
        self.module = module

    def __call__(self, *args, **kwargs):
        return self.module(*args, **kwargs)

    # forward == __call__, mirroring nn.Module
    forward = __call__

    @contextmanager
    def join(self):
        # no-op join context, identical to the reference
        yield


# ---------------------------------- Main --------------------------------------

if __name__ == "__main__":
    key = jax.random.PRNGKey(0)
    k_param, k_x = jax.random.split(key)

    # M = B*S = 512 rows, H = 512: weight-resident path, grid (1, 2) with the
    # M axis "parallel" (2 tiles -> v7x megacore), no padding, no output slice.
    B, S, H = 2, 256, 512
    inner = InnerLinearReLU(H, k_param)
    model = DummyDDPWrapper(inner)

    x = jax.random.normal(k_x, (B, S, H), dtype=jnp.float32)

    with model.join():
        y = model(x)
    y = jax.block_until_ready(y)

    # Reference: same bf16-input / f32-accumulate math in plain JAX.
    x_bf = x.reshape(B * S, H).astype(jnp.bfloat16)
    ref = jnp.maximum(
        jnp.dot(x_bf, inner.w, preferred_element_type=jnp.float32) + inner.b, 0.0
    ).reshape(B, S, H)

    assert y.shape == (B, S, H)
    assert y.dtype == x.dtype
    assert jnp.allclose(y, ref, atol=1e-2, rtol=1e-2)

    print("KERNEL_OK")
</pallas_src>

<mosaic_0001>
module attributes {stable_mosaic.version = 11 : i64} {
  func.func @_linear_relu_resident_kernel(%arg0: i32, %arg1: i32, %arg2: memref<256x512xf32, #tpu.memory_space<vmem>>, %arg3: memref<512x512xbf16, #tpu.memory_space<vmem>>, %arg4: memref<1x512xf32, #tpu.memory_space<vmem>>, %arg5: memref<256x512xf32, #tpu.memory_space<vmem>>) attributes {dimension_semantics = [#tpu.dimension_semantics<parallel>, #tpu.dimension_semantics<parallel>], iteration_bounds = array<i64: 1, 2>, scalar_prefetch = 0 : i64, scratch_operands = 0 : i64, tpu.core_type = #tpu.core_type<tc>, window_params = [{transform_indices = @transform_0, window_bounds = array<i64: 256, 512>}, {transform_indices = @transform_1, window_bounds = array<i64: 512, 512>}, {transform_indices = @transform_2, window_bounds = array<i64: 1, 512>}, {transform_indices = @transform_3, window_bounds = array<i64: 256, 512>}]} {
    %c0 = arith.constant 0 : index
    %c0_0 = arith.constant 0 : index
    %0 = vector.load %arg2[%c0, %c0_0] : memref<256x512xf32, #tpu.memory_space<vmem>>, vector<256x512xf32>
    %1 = arith.truncf %0 : vector<256x512xf32> to vector<256x512xbf16>
    %c0_1 = arith.constant 0 : index
    %c0_2 = arith.constant 0 : index
    %2 = vector.load %arg3[%c0_1, %c0_2] : memref<512x512xbf16, #tpu.memory_space<vmem>>, vector<512x512xbf16>
    %cst = arith.constant dense<0.000000e+00> : vector<256x512xf32>
    %3 = tpu.matmul %1, %2, %cst {dimension_numbers = #tpu.dot_dimension_numbers<[1], [0], [0], [1], [0, 0, 1, 1], [], []>} : vector<256x512xbf16>, vector<512x512xbf16>, vector<256x512xf32> -> vector<256x512xf32>
    %c0_3 = arith.constant 0 : index
    %c0_4 = arith.constant 0 : index
    %4 = vector.load %arg4[%c0_3, %c0_4] : memref<1x512xf32, #tpu.memory_space<vmem>>, vector<1x512xf32>
    %5 = vector.broadcast %4 : vector<1x512xf32> to vector<256x512xf32>
    %6 = arith.addf %3, %5 : vector<256x512xf32>
    %cst_5 = arith.constant 0.000000e+00 : f32
    %7 = vector.broadcast %cst_5 : f32 to vector<256x512xf32>
    %8 = arith.maximumf %6, %7 : vector<256x512xf32>
    %c0_6 = arith.constant 0 : index
    %c0_7 = arith.constant 0 : index
    %9 = vector.load %arg5[%c0_6, %c0_7] : memref<256x512xf32, #tpu.memory_space<vmem>>, vector<256x512xf32>
    tpu.vector_store %arg5[%c0_6, %c0_7], %8 {strides = array<i32>} : memref<256x512xf32, #tpu.memory_space<vmem>>, vector<256x512xf32>,
    return
  }
  func.func @transform_0(%arg0: i32, %arg1: i32) -> (i32, i32) {
    %c0_i32 = arith.constant 0 : i32
    %c0_i32_0 = arith.constant 0 : i32
    return %arg1, %c0_i32 : i32, i32
  }
  func.func @transform_1(%arg0: i32, %arg1: i32) -> (i32, i32) {
    %c0_i32 = arith.constant 0 : i32
    %c0_i32_0 = arith.constant 0 : i32
    return %c0_i32, %arg0 : i32, i32
  }
  func.func @transform_2(%arg0: i32, %arg1: i32) -> (i32, i32) {
    %c0_i32 = arith.constant 0 : i32
    %c0_i32_0 = arith.constant 0 : i32
    return %c0_i32, %arg0 : i32, i32
  }
  func.func @transform_3(%arg0: i32, %arg1: i32) -> (i32, i32) {
    %c0_i32 = arith.constant 0 : i32
    return %arg1, %arg0 : i32, i32
  }
}

</mosaic_0001>

<llo_original>
// kernel: tpu_custom_call.1
$region0: #{tpu_custom_call.1}
  #allocation0 [shape = 'u32[]', space=smem, size = 0x4, offset = 0x4, fixed_abs, tag = 'smem constant byte address 0x4 - core index']
  #allocation1 [shape = 'u32[72,128]{1,0:T(1,128)}', space=vmem, size = 0x9000, scoped, tag = 'internal scratch']
  %s0 = inlined_call_operand.hbm [shape: f32[512,512], index: 0, kind: input, shape index: {}]
  %s1 = inlined_call_operand.hbm [shape: bf16[512,512], index: 1, kind: input, shape index: {}]
  %s2 = inlined_call_operand.hbm [shape: f32[1,512], index: 2, kind: input, shape index: {}]
  %s3 = inlined_call_operand.hbm [shape: f32[512,512], index: 3, kind: output, shape index: {}]
  %s4 = sld [smem:[#allocation0]]
  $region57: #{tpu_custom_call.1} parent=0
    _
  %s6 = ssub.s32 1, %s4
  %s7 = scalar_select 0, %s6, %s4
  $region1: #{tpu_custom_call.1} parent=0
    #allocation2 [shape = 'u8[1048576]{0}', space=vmem, size = 0x100000, scoped, tag = 'input window, operand 0']
    #allocation3 [shape = 's32[2]{0}', space=sflag, size = 0x8, scoped, tag = 'scoped memory for tpu_custom_call.1']
    #allocation4 [shape = 's32[2]{0}', space=sflag, size = 0x8, scoped, tag = 'scoped memory for tpu_custom_call.1']
    #allocation5 [shape = 'u8[524288]{0}', space=vmem, size = 0x80000, scoped, tag = 'input window, operand 1, single buffered']
    #allocation6 [shape = 's32[1]{0}', space=sflag, size = 0x4, scoped, tag = 'scoped memory for tpu_custom_call.1']
    #allocation7 [shape = 'u8[2048]{0}', space=vmem, size = 0x800, scoped, tag = 'input window, operand 2, single buffered']
    #allocation8 [shape = 'u8[1048576]{0}', space=vmem, size = 0x100000, scoped, tag = 'output window, operand 0']
    %8 = vsyncpa [#allocation3], 0
    %s9 = scalar_lea.sflag [#allocation3], 1
    %10 = vsyncpa %s9, 0
    %11 = vsyncpa [#allocation6], 0
    %12 = vsyncpa [#allocation4], 0
    %s13 = scalar_lea.sflag [#allocation4], 1
    %14 = vsyncpa %s13, 0
    loop: start=0, step=1, limit=4
    $region2: #{tpu_custom_call.1} parent=1 // loop_pre_header
      _
    $region3: #{tpu_custom_call.1} parent=1 // loop_header
      %s16 = sphi 0, %s20
      %p17 = scmp.ge.s32.totalorder %s16, 4
      %s23 = sphi 0, %s35
      %s24 = sphi 0, %s31
      %s25 = sphi 0, %s23
      %s26 = sphi 0, %s24
      %s27 = sphi 0, %s25
      %s28 = sphi 0, %s26
      %s38 = sphi 0, %s40
      %s41 = sphi 0, %s38
      %s42 = sphi 0, %s41
      %s58 = sphi 0, %s42
      %s64 = sphi 0, %s66
      %s67 = sphi 0, %s64
      %s68 = sphi 0, %s67
      %s84 = sphi 0, %s68
      %s90 = sphi 0, %s92
      %s93 = sphi 0, %s90
      %s94 = sphi 0, %s93
      %s110 = sphi 0, %s94
      %s118 = sphi 0, %s120
      %s121 = sphi 0, %s118
      %s122 = sphi 0, %s121
      %s138 = sphi 0, %s122
    $region4: #{tpu_custom_call.1} parent=1 // loop_header_branch
      %19 = sbr.rel (%p17) target = $region8
    $region5: #{tpu_custom_call.1} parent=1 // loop_body
      %s21 = ssub.s32 %s16, 1
      %s22 = ssub.s32 %s16, 2
      %s29 = sadd.s32 1, %s24
      %p30 = scmp.ge.s32.totalorder %s29, 2
      %s31 = scalar_select %p30, 0, %s29
      %s32 = sadd.s32 1, %s23
      %s33 = scalar_select %p30, %s32, %s23
      %p34 = scmp.ge.s32.totalorder %s33, 1
      %s35 = scalar_select %p34, 0, %s33
      %s36 = ssub.s32 %s24, %s31
      %p37 = scmp.eq.s32.totalorder %s36, 0
      %s39 = sadd.s32 %s38, 1
      %s40 = scalar_select %p37, %s38, %s39
      %p43 = pneg %p37
      %p44 = scmp.eq.s32.totalorder %s16, 1
      %p45 = por %p43, %p44
      %p46 = scmp.ne.s32.totalorder %s38, %s41
      %p47 = scmp.eq.s32.totalorder %s16, 0
      %p48 = por %p46, %p47
      %p49 = scmp.ne.s32.totalorder %s38, %s41
      %p50 = scmp.eq.s32.totalorder %s21, 1
      %p51 = por %p49, %p50
      %p52 = scmp.ne.s32.totalorder %s41, %s42
      %p53 = scmp.eq.s32.totalorder %s21, 0
      %p54 = por %p52, %p53
      %p55 = scmp.ne.s32.totalorder %s41, %s42
      %p56 = scmp.eq.s32.totalorder %s22, 1
      %p57 = por %p55, %p56
      %p59 = scmp.ne.s32.totalorder %s42, %s58
      %p60 = scmp.eq.s32.totalorder %s22, 0
      %p61 = por %p59, %p60
      %s62 = ssub.s32 %s23, %s35
      %p63 = scmp.eq.s32.totalorder %s62, 0
      %s65 = sadd.s32 %s64, 1
      %s66 = scalar_select %p63, %s64, %s65
      %p69 = pneg %p63
      %p70 = scmp.eq.s32.totalorder %s16, 1
      %p71 = por %p69, %p70
      %p72 = scmp.ne.s32.totalorder %s64, %s67
      %p73 = scmp.eq.s32.totalorder %s16, 0
      %p74 = por %p72, %p73
      %p75 = scmp.ne.s32.totalorder %s64, %s67
      %p76 = scmp.eq.s32.totalorder %s21, 1
      %p77 = por %p75, %p76
      %p78 = scmp.ne.s32.totalorder %s67, %s68
      %p79 = scmp.eq.s32.totalorder %s21, 0
      %p80 = por %p78, %p79
      %p81 = scmp.ne.s32.totalorder %s67, %s68
      %p82 = scmp.eq.s32.totalorder %s22, 1
      %p83 = por %p81, %p82
      %p85 = scmp.ne.s32.totalorder %s68, %s84
      %p86 = scmp.eq.s32.totalorder %s22, 0
      %p87 = por %p85, %p86
      %s88 = ssub.s32 %s23, %s35
      %p89 = scmp.eq.s32.totalorder %s88, 0
      %s91 = sadd.s32 %s90, 1
      %s92 = scalar_select %p89, %s90, %s91
      %p95 = pneg %p89
      %p96 = scmp.eq.s32.totalorder %s16, 1
      %p97 = por %p95, %p96
      %p98 = scmp.ne.s32.totalorder %s90, %s93
      %p99 = scmp.eq.s32.totalorder %s16, 0
      %p100 = por %p98, %p99
      %p101 = scmp.ne.s32.totalorder %s90, %s93
      %p102 = scmp.eq.s32.totalorder %s21, 1
      %p103 = por %p101, %p102
      %p104 = scmp.ne.s32.totalorder %s93, %s94
      %p105 = scmp.eq.s32.totalorder %s21, 0
      %p106 = por %p104, %p105
      %p107 = scmp.ne.s32.totalorder %s93, %s94
      %p108 = scmp.eq.s32.totalorder %s22, 1
      %p109 = por %p107, %p108
      %p111 = scmp.ne.s32.totalorder %s94, %s110
      %p112 = scmp.eq.s32.totalorder %s22, 0
      %p113 = por %p111, %p112
      %s114 = ssub.s32 %s24, %s31
      %s115 = ssub.s32 %s23, %s35
      %s116 = sor.u32 %s114, %s115
      %p117 = scmp.eq.s32.totalorder %s116, 0
      %s119 = sadd.s32 %s118, 1
      %s120 = scalar_select %p117, %s118, %s119
      %p123 = pneg %p117
      %p124 = scmp.eq.s32.totalorder %s16, 1
      %p125 = por %p123, %p124
      %p126 = scmp.ne.s32.totalorder %s118, %s121
      %p127 = scmp.eq.s32.totalorder %s16, 0
      %p128 = por %p126, %p127
      %p129 = scmp.ne.s32.totalorder %s118, %s121
      %p130 = scmp.eq.s32.totalorder %s21, 1
      %p131 = por %p129, %p130
      %p132 = scmp.ne.s32.totalorder %s121, %s122
      %p133 = scmp.eq.s32.totalorder %s21, 0
      %p134 = por %p132, %p133
      %p135 = scmp.ne.s32.totalorder %s121, %s122
      %p136 = scmp.eq.s32.totalorder %s22, 1
      %p137 = por %p135, %p136
      %p139 = scmp.ne.s32.totalorder %s122, %s138
      %p140 = scmp.eq.s32.totalorder %s22, 0
      %p141 = por %p139, %p140
      %p142 = scmp.le.s32.totalorder 1, %s16
      %p143 = scmp.lt.s32.totalorder %s16, 3
      %p144 = pnand %p142, %p143
      %p145 = pneg %p144
      // Predicated region
      $region9: #{tpu_custom_call.1} parent=5 // pred_check
        _
      $region10: #{tpu_custom_call.1} parent=5 // pred_check_branch
        %147 = sbr.rel (%p144) target = $region12
      $region11: #{tpu_custom_call.1} parent=5 // pred_region
        %s148 = ssub.s32 %s16, 1
        // Predicated region
        $region13: #{tpu_custom_call.1} parent=11 // pred_check
          %p149 = pneg %p80
        $region14: #{tpu_custom_call.1} parent=11 // pred_check_branch
          %151 = sbr.rel (%p149) target = $region16
        $region15: #{tpu_custom_call.1} parent=11 // pred_region
          %s152 = smul.u32 4, %s25
          %154 = vsyncadd [#allocation6], 0
          %s155 = smul.addr %s152, 4
          %s156 = scalar_lea.hbm %s1, %s155
          %s157 = sshll.u32 %s156, 4
          %s158 = int_to_ptr.hbm [resolvable:$true] %s157
          %s159 = sshll.u32 [#allocation5], 4
          %s160 = int_to_ptr.vmem [resolvable:$true] %s159
          %165 = dma.hbm_to_vmem [thread:$0]  %s158, 16384, %s160, [#allocation6], 256, 256, 16
        $region16: #{tpu_custom_call.1} parent=11 // pred_fallthru
          _
        // Predicated region
        $region17: #{tpu_custom_call.1} parent=11 // pred_check
          %p166 = pneg %p106
        $region18: #{tpu_custom_call.1} parent=11 // pred_check_branch
          %168 = sbr.rel (%p166) target = $region20
        $region19: #{tpu_custom_call.1} parent=11 // pred_region
          %s169 = smul.u32 4, %s25
          %171 = vsyncadd [#allocation6], 0
          %s172 = scalar_lea.hbm %s2, %s169
          %s174 = sshll.u32 %s172, 4
          %s175 = int_to_ptr.hbm [resolvable:$true] %s174
          %s176 = sshll.u32 [#allocation7], 4
          %s177 = int_to_ptr.vmem [resolvable:$true] %s176
          %179 = dma.hbm_to_vmem [thread:$0]  %s175, 64, %s177, [#allocation6]
        $region20: #{tpu_custom_call.1} parent=11 // pred_fallthru
          _
      $region12: #{tpu_custom_call.1} parent=5 // pred_fallthru
        _
      %p180 = scmp.lt.s32.totalorder %s16, 2
      // Predicated region
      $region21: #{tpu_custom_call.1} parent=5 // pred_check
        %p181 = pneg %p180
      $region22: #{tpu_custom_call.1} parent=5 // pred_check_branch
        %183 = sbr.rel (%p181) target = $region24
      $region23: #{tpu_custom_call.1} parent=5 // pred_region
        // Predicated region
        $region25: #{tpu_custom_call.1} parent=23 // pred_check
          %p184 = pneg %p48
        $region26: #{tpu_custom_call.1} parent=23 // pred_check_branch
          %186 = sbr.rel (%p184) target = $region28
        $region27: #{tpu_custom_call.1} parent=23 // pred_region
          %s187 = sand.u32 %s38, 1
          %s188 = scalar_lea.sflag [#allocation3], %s187
          %s189 = sand.u32 %s38, 1
          %s190 = smul.addr %s189, 1024
          %s191 = scalar_lea.vmem [#allocation2], %s190
          %s192 = smul.u32 32, %s24
          %194 = vsyncadd %s188, 0
          %s195 = smul.addr %s192, 4
          %s196 = smul.addr %s195, 8
          %s197 = scalar_lea.hbm %s0, %s196
          %s198 = sshll.u32 %s197, 4
          %s199 = int_to_ptr.hbm [resolvable:$true] %s198
          %s200 = sshll.u32 %s191, 4
          %s201 = int_to_ptr.vmem [resolvable:$true] %s200
          %206 = dma.hbm_to_vmem [thread:$0]  %s199, 16384, %s201, %s188, 512, 512, 32
        $region28: #{tpu_custom_call.1} parent=23 // pred_fallthru
          _
      $region24: #{tpu_custom_call.1} parent=5 // pred_fallthru
        _
      %p207 = scmp.le.s32.totalorder 1, %s16
      %p208 = scmp.lt.s32.totalorder %s16, 3
      %p209 = pnand %p207, %p208
      %p210 = pneg %p209
      // Predicated region
      $region29: #{tpu_custom_call.1} parent=5 // pred_check
        _
      $region30: #{tpu_custom_call.1} parent=5 // pred_check_branch
        %212 = sbr.rel (%p209) target = $region32
      $region31: #{tpu_custom_call.1} parent=5 // pred_region
        %s213 = ssub.s32 %s16, 1
        %s214 = sand.u32 %s41, 1
        %s215 = scalar_lea.sflag [#allocation3], %s214
        %s216 = sand.u32 %s41, 1
        %s217 = smul.addr %s216, 1024
        %s218 = scalar_lea.vmem [#allocation2], %s217
        // Predicated region
        $region33: #{tpu_custom_call.1} parent=31 // pred_check
          %p219 = pneg %p54
        $region34: #{tpu_custom_call.1} parent=31 // pred_check_branch
          %221 = sbr.rel (%p219) target = $region36
        $region35: #{tpu_custom_call.1} parent=31 // pred_region
          %223 = dma.done %s215, 16384
        $region36: #{tpu_custom_call.1} parent=31 // pred_fallthru
          _
        // Predicated region
        $region37: #{tpu_custom_call.1} parent=31 // pred_check
          %p224 = pneg %p80
        $region38: #{tpu_custom_call.1} parent=31 // pred_check_branch
          %226 = sbr.rel (%p224) target = $region40
        $region39: #{tpu_custom_call.1} parent=31 // pred_region
          %228 = dma.done [#allocation6], 16384
        $region40: #{tpu_custom_call.1} parent=31 // pred_fallthru
          _
        // Predicated region
        $region41: #{tpu_custom_call.1} parent=31 // pred_check
          %p229 = pneg %p106
        $region42: #{tpu_custom_call.1} parent=31 // pred_check_branch
          %231 = sbr.rel (%p229) target = $region44
        $region43: #{tpu_custom_call.1} parent=31 // pred_region
          %233 = dma.done [#allocation6], 64
        $region44: #{tpu_custom_call.1} parent=31 // pred_fallthru
          _
        %s234 = sand.u32 %s41, 1
        %s235 = scalar_lea.sflag [#allocation3], %s234
        %s236 = sand.u32 %s41, 1
        %s237 = smul.addr %s236, 1024
        %s238 = scalar_lea.vmem [#allocation2], %s237
        %p239 = pneg %p54
        %p240 = pneg %p51
        %p241 = pneg %p80
        %p242 = pneg %p77
        %p243 = pneg %p106
        %p244 = pneg %p103
        %p245 = pneg %p134
        %p246 = pneg %p131
        %s247 = sand.u32 %s121, 1
        %s248 = scalar_lea.sflag [#allocation4], %s247
        %s249 = sand.u32 %s121, 1
        %s250 = smul.addr %s249, 1024
        %s251 = scalar_lea.vmem [#allocation8], %s250
        %s252 = smul.u32 32, %s26
        %s253 = smul.u32 4, %s25
        %s254 = smul.u32 4, %s25
        %s255 = smul.u32 32, %s26
        %s256 = smul.u32 4, %s25
        %v257 = vld [vmem:[%s218] sm:$0xff]
        %v258 = vld [vmem:[%s218 + $0x8] sm:$0xff]
        %v259 = vld [vmem:[%s218 + $0x10] sm:$0xff]
        %v260 = vld [vmem:[%s218 + $0x18] sm:$0xff]
        %v261 = vld [vmem:[%s218 + $0x20] sm:$0xff]
        %v262 = vld [vmem:[%s218 + $0x28] sm:$0xff]
        %v263 = vld [vmem:[%s218 + $0x30] sm:$0xff]
        %v264 = vld [vmem:[%s218 + $0x38] sm:$0xff]
        %v265 = vld [vmem:[%s218 + $0x40] sm:$0xff]
        %v266 = vld [vmem:[%s218 + $0x48] sm:$0xff]
        %v267 = vld [vmem:[%s218 + $0x50] sm:$0xff]
        %v268 = vld [vmem:[%s218 + $0x58] sm:$0xff]
        %v269 = vld [vmem:[%s218 + $0x60] sm:$0xff]
        %v270 = vld [vmem:[%s218 + $0x68] sm:$0xff]
        %v271 = vld [vmem:[%s218 + $0x70] sm:$0xff]
        %v272 = vld [vmem:[%s218 + $0x78] sm:$0xff]
        %v273 = vld [vmem:[%s218 + $0x80] sm:$0xff]
        %v274 = vld [vmem:[%s218 + $0x88] sm:$0xff]
        %v275 = vld [vmem:[%s218 + $0x90] sm:$0xff]
        %v276 = vld [vmem:[%s218 + $0x98] sm:$0xff]
        %v277 = vld [vmem:[%s218 + $0xa0] sm:$0xff]
        %v278 = vld [vmem:[%s218 + $0xa8] sm:$0xff]
        %v279 = vld [vmem:[%s218 + $0xb0] sm:$0xff]
        %v280 = vld [vmem:[%s218 + $0xb8] sm:$0xff]
        %v281 = vld [vmem:[%s218 + $0xc0] sm:$0xff]
        %v282 = vld [vmem:[%s218 + $0xc8] sm:$0xff]
        %v283 = vld [vmem:[%s218 + $0xd0] sm:$0xff]
        %v284 = vld [vmem:[%s218 + $0xd8] sm:$0xff]
        %v285 = vld [vmem:[%s218 + $0xe0] sm:$0xff]
        %v286 = vld [vmem:[%s218 + $0xe8] sm:$0xff]
        %v287 = vld [vmem:[%s218 + $0xf0] sm:$0xff]
        %v288 = vld [vmem:[%s218 + $0xf8] sm:$0xff]
        %v289 = vld [vmem:[%s218 + $0x100] sm:$0xff]
        %v290 = vld [vmem:[%s218 + $0x108] sm:$0xff]
        %v291 = vld [vmem:[%s218 + $0x110] sm:$0xff]
        %v292 = vld [vmem:[%s218 + $0x118] sm:$0xff]
        %v293 = vld [vmem:[%s218 + $0x120] sm:$0xff]
        %v294 = vld [vmem:[%s218 + $0x128] sm:$0xff]
        %v295 = vld [vmem:[%s218 + $0x130] sm:$0xff]
        %v296 = vld [vmem:[%s218 + $0x138] sm:$0xff]
        %v297 = vld [vmem:[%s218 + $0x140] sm:$0xff]
        %v298 = vld [vmem:[%s218 + $0x148] sm:$0xff]
        %v299 = vld [vmem:[%s218 + $0x150] sm:$0xff]
        %v300 = vld [vmem:[%s218 + $0x158] sm:$0xff]
        %v301 = vld [vmem:[%s218 + $0x160] sm:$0xff]
        %v302 = vld [vmem:[%s218 + $0x168] sm:$0xff]
        %v303 = vld [vmem:[%s218 + $0x170] sm:$0xff]
        %v304 = vld [vmem:[%s218 + $0x178] sm:$0xff]
        %v305 = vld [vmem:[%s218 + $0x180] sm:$0xff]
        %v306 = vld [vmem:[%s218 + $0x188] sm:$0xff]
        %v307 = vld [vmem:[%s218 + $0x190] sm:$0xff]
        %v308 = vld [vmem:[%s218 + $0x198] sm:$0xff]
        %v309 = vld [vmem:[%s218 + $0x1a0] sm:$0xff]
        %v310 = vld [vmem:[%s218 + $0x1a8] sm:$0xff]
        %v311 = vld [vmem:[%s218 + $0x1b0] sm:$0xff]
        %v312 = vld [vmem:[%s218 + $0x1b8] sm:$0xff]
        %v313 = vld [vmem:[%s218 + $0x1c0] sm:$0xff]
        %v314 = vld [vmem:[%s218 + $0x1c8] sm:$0xff]
        %v315 = vld [vmem:[%s218 + $0x1d0] sm:$0xff]
        %v316 = vld [vmem:[%s218 + $0x1d8] sm:$0xff]
        %v317 = vld [vmem:[%s218 + $0x1e0] sm:$0xff]
        %v318 = vld [vmem:[%s218 + $0x1e8] sm:$0xff]
        %v319 = vld [vmem:[%s218 + $0x1f0] sm:$0xff]
        %v320 = vld [vmem:[%s218 + $0x1f8] sm:$0xff]
        %v321 = vld [vmem:[%s218 + $0x200] sm:$0xff]
        %v322 = vld [vmem:[%s218 + $0x208] sm:$0xff]
        %v323 = vld [vmem:[%s218 + $0x210] sm:$0xff]
        %v324 = vld [vmem:[%s218 + $0x218] sm:$0xff]
        %v325 = vld [vmem:[%s218 + $0x220] sm:$0xff]
        %v326 = vld [vmem:[%s218 + $0x228] sm:$0xff]
        %v327 = vld [vmem:[%s218 + $0x230] sm:$0xff]
        %v328 = vld [vmem:[%s218 + $0x238] sm:$0xff]
        %v329 = vld [vmem:[%s218 + $0x240] sm:$0xff]
        %v330 = vld [vmem:[%s218 + $0x248] sm:$0xff]
        %v331 = vld [vmem:[%s218 + $0x250] sm:$0xff]
        %v332 = vld [vmem:[%s218 + $0x258] sm:$0xff]
        %v333 = vld [vmem:[%s218 + $0x260] sm:$0xff]
        %v334 = vld [vmem:[%s218 + $0x268] sm:$0xff]
        %v335 = vld [vmem:[%s218 + $0x270] sm:$0xff]
        %v336 = vld [vmem:[%s218 + $0x278] sm:$0xff]
        %v337 = vld [vmem:[%s218 + $0x280] sm:$0xff]
        %v338 = vld [vmem:[%s218 + $0x288] sm:$0xff]
        %v339 = vld [vmem:[%s218 + $0x290] sm:$0xff]
        %v340 = vld [vmem:[%s218 + $0x298] sm:$0xff]
        %v341 = vld [vmem:[%s218 + $0x2a0] sm:$0xff]
        %v342 = vld [vmem:[%s218 + $0x2a8] sm:$0xff]
        %v343 = vld [vmem:[%s218 + $0x2b0] sm:$0xff]
        %v344 = vld [vmem:[%s218 + $0x2b8] sm:$0xff]
        %v345 = vld [vmem:[%s218 + $0x2c0] sm:$0xff]
        %v346 = vld [vmem:[%s218 + $0x2c8] sm:$0xff]
        %v347 = vld [vmem:[%s218 + $0x2d0] sm:$0xff]
        %v348 = vld [vmem:[%s218 + $0x2d8] sm:$0xff]
        %v349 = vld [vmem:[%s218 + $0x2e0] sm:$0xff]
        %v350 = vld [vmem:[%s218 + $0x2e8] sm:$0xff]
        %v351 = vld [vmem:[%s218 + $0x2f0] sm:$0xff]
        %v352 = vld [vmem:[%s218 + $0x2f8] sm:$0xff]
        %v353 = vld [vmem:[%s218 + $0x300] sm:$0xff]
        %v354 = vld [vmem:[%s218 + $0x308] sm:$0xff]
        %v355 = vld [vmem:[%s218 + $0x310] sm:$0xff]
        %v356 = vld [vmem:[%s218 + $0x318] sm:$0xff]
        %v357 = vld [vmem:[%s218 + $0x320] sm:$0xff]
        %v358 = vld [vmem:[%s218 + $0x328] sm:$0xff]
        %v359 = vld [vmem:[%s218 + $0x330] sm:$0xff]
        %v360 = vld [vmem:[%s218 + $0x338] sm:$0xff]
        %v361 = vld [vmem:[%s218 + $0x340] sm:$0xff]
        %v362 = vld [vmem:[%s218 + $0x348] sm:$0xff]
        %v363 = vld [vmem:[%s218 + $0x350] sm:$0xff]
        %v364 = vld [vmem:[%s218 + $0x358] sm:$0xff]
        %v365 = vld [vmem:[%s218 + $0x360] sm:$0xff]
        %v366 = vld [vmem:[%s218 + $0x368] sm:$0xff]
        %v367 = vld [vmem:[%s218 + $0x370] sm:$0xff]
        %v368 = vld [vmem:[%s218 + $0x378] sm:$0xff]
        %v369 = vld [vmem:[%s218 + $0x380] sm:$0xff]
        %v370 = vld [vmem:[%s218 + $0x388] sm:$0xff]
        %v371 = vld [vmem:[%s218 + $0x390] sm:$0xff]
        %v372 = vld [vmem:[%s218 + $0x398] sm:$0xff]
        %v373 = vld [vmem:[%s218 + $0x3a0] sm:$0xff]
        %v374 = vld [vmem:[%s218 + $0x3a8] sm:$0xff]
        %v375 = vld [vmem:[%s218 + $0x3b0] sm:$0xff]
        %v376 = vld [vmem:[%s218 + $0x3b8] sm:$0xff]
        %v377 = vld [vmem:[%s218 + $0x3c0] sm:$0xff]
        %v378 = vld [vmem:[%s218 + $0x3c8] sm:$0xff]
        %v379 = vld [vmem:[%s218 + $0x3d0] sm:$0xff]
        %v380 = vld [vmem:[%s218 + $0x3d8] sm:$0xff]
        %v381 = vld [vmem:[%s218 + $0x3e0] sm:$0xff]
        %v382 = vld [vmem:[%s218 + $0x3e8] sm:$0xff]
        %v383 = vld [vmem:[%s218 + $0x3f0] sm:$0xff]
        %v384 = vld [vmem:[%s218 + $0x3f8] sm:$0xff]
        %v385 = vpack.c.bf16 %v261, %v257
        %v386 = vpack.c.bf16 %v262, %v258
        %v387 = vpack.c.bf16 %v263, %v259
        %v388 = vpack.c.bf16 %v264, %v260
        %v389 = vpack.c.bf16 %v269, %v265
        %v390 = vpack.c.bf16 %v270, %v266
        %v391 = vpack.c.bf16 %v271, %v267
        %v392 = vpack.c.bf16 %v272, %v268
        %v393 = vpack.c.bf16 %v277, %v273
        %v394 = vpack.c.bf16 %v278, %v274
        %v395 = vpack.c.bf16 %v279, %v275
        %v396 = vpack.c.bf16 %v280, %v276
        %v397 = vpack.c.bf16 %v285, %v281
        %v398 = vpack.c.bf16 %v286, %v282
        %v399 = vpack.c.bf16 %v287, %v283
        %v400 = vpack.c.bf16 %v288, %v284
        %v401 = vpack.c.bf16 %v293, %v289
        %v402 = vpack.c.bf16 %v294, %v290
        %v403 = vpack.c.bf16 %v295, %v291
        %v404 = vpack.c.bf16 %v296, %v292
        %v405 = vpack.c.bf16 %v301, %v297
        %v406 = vpack.c.bf16 %v302, %v298
        %v407 = vpack.c.bf16 %v303, %v299
        %v408 = vpack.c.bf16 %v304, %v300
        %v409 = vpack.c.bf16 %v309, %v305
        %v410 = vpack.c.bf16 %v310, %v306
        %v411 = vpack.c.bf16 %v311, %v307
        %v412 = vpack.c.bf16 %v312, %v308
        %v413 = vpack.c.bf16 %v317, %v313
        %v414 = vpack.c.bf16 %v318, %v314
        %v415 = vpack.c.bf16 %v319, %v315
        %v416 = vpack.c.bf16 %v320, %v316
        %v417 = vpack.c.bf16 %v325, %v321
        %v418 = vpack.c.bf16 %v326, %v322
        %v419 = vpack.c.bf16 %v327, %v323
        %v420 = vpack.c.bf16 %v328, %v324
        %v421 = vpack.c.bf16 %v333, %v329
        %v422 = vpack.c.bf16 %v334, %v330
        %v423 = vpack.c.bf16 %v335, %v331
        %v424 = vpack.c.bf16 %v336, %v332
        %v425 = vpack.c.bf16 %v341, %v337
        %v426 = vpack.c.bf16 %v342, %v338
        %v427 = vpack.c.bf16 %v343, %v339
        %v428 = vpack.c.bf16 %v344, %v340
        %v429 = vpack.c.bf16 %v349, %v345
        %v430 = vpack.c.bf16 %v350, %v346
        %v431 = vpack.c.bf16 %v351, %v347
        %v432 = vpack.c.bf16 %v352, %v348
        %v433 = vpack.c.bf16 %v357, %v353
        %v434 = vpack.c.bf16 %v358, %v354
        %v435 = vpack.c.bf16 %v359, %v355
        %v436 = vpack.c.bf16 %v360, %v356
        %v437 = vpack.c.bf16 %v365, %v361
        %v438 = vpack.c.bf16 %v366, %v362
        %v439 = vpack.c.bf16 %v367, %v363
        %v440 = vpack.c.bf16 %v368, %v364
        %v441 = vpack.c.bf16 %v373, %v369
        %v442 = vpack.c.bf16 %v374, %v370
        %v443 = vpack.c.bf16 %v375, %v371
        %v444 = vpack.c.bf16 %v376, %v372
        %v445 = vpack.c.bf16 %v381, %v377
        %v446 = vpack.c.bf16 %v382, %v378
        %v447 = vpack.c.bf16 %v383, %v379
        %v448 = vpack.c.bf16 %v384, %v380
        %v449 = vld [vmem:[#allocation5] sm:$0xff]
        %v450 = vld [vmem:[#allocation5 + $0x8] sm:$0xff]
        %v451 = vld [vmem:[#allocation5 + $0x10] sm:$0xff]
        %v452 = vld [vmem:[#allocation5 + $0x18] sm:$0xff]
        %v453 = vld [vmem:[#allocation5 + $0x20] sm:$0xff]
        %v454 = vld [vmem:[#allocation5 + $0x28] sm:$0xff]
        %v455 = vld [vmem:[#allocation5 + $0x30] sm:$0xff]
        %v456 = vld [vmem:[#allocation5 + $0x38] sm:$0xff]
        %v457 = vld [vmem:[#allocation5 + $0x40] sm:$0xff]
        %v458 = vld [vmem:[#allocation5 + $0x48] sm:$0xff]
        %v459 = vld [vmem:[#allocation5 + $0x50] sm:$0xff]
        %v460 = vld [vmem:[#allocation5 + $0x58] sm:$0xff]
        %v461 = vld [vmem:[#allocation5 + $0x60] sm:$0xff]
        %v462 = vld [vmem:[#allocation5 + $0x68] sm:$0xff]
        %v463 = vld [vmem:[#allocation5 + $0x70] sm:$0xff]
        %v464 = vld [vmem:[#allocation5 + $0x78] sm:$0xff]
        %v465 = vld [vmem:[#allocation5 + $0x80] sm:$0xff]
        %v466 = vld [vmem:[#allocation5 + $0x88] sm:$0xff]
        %v467 = vld [vmem:[#allocation5 + $0x90] sm:$0xff]
        %v468 = vld [vmem:[#allocation5 + $0x98] sm:$0xff]
        %v469 = vld [vmem:[#allocation5 + $0xa0] sm:$0xff]
        %v470 = vld [vmem:[#allocation5 + $0xa8] sm:$0xff]
        %v471 = vld [vmem:[#allocation5 + $0xb0] sm:$0xff]
        %v472 = vld [vmem:[#allocation5 + $0xb8] sm:$0xff]
        %v473 = vld [vmem:[#allocation5 + $0xc0] sm:$0xff]
        %v474 = vld [vmem:[#allocation5 + $0xc8] sm:$0xff]
        %v475 = vld [vmem:[#allocation5 + $0xd0] sm:$0xff]
        %v476 = vld [vmem:[#allocation5 + $0xd8] sm:$0xff]
        %v477 = vld [vmem:[#allocation5 + $0xe0] sm:$0xff]
        %v478 = vld [vmem:[#allocation5 + $0xe8] sm:$0xff]
        %v479 = vld [vmem:[#allocation5 + $0xf0] sm:$0xff]
        %v480 = vld [vmem:[#allocation5 + $0xf8] sm:$0xff]
        %v481 = vld [vmem:[#allocation5 + $0x100] sm:$0xff]
        %v482 = vld [vmem:[#allocation5 + $0x108] sm:$0xff]
        %v483 = vld [vmem:[#allocation5 + $0x110] sm:$0xff]
        %v484 = vld [vmem:[#allocation5 + $0x118] sm:$0xff]
        %v485 = vld [vmem:[#allocation5 + $0x120] sm:$0xff]
        %v486 = vld [vmem:[#allocation5 + $0x128] sm:$0xff]
        %v487 = vld [vmem:[#allocation5 + $0x130] sm:$0xff]
        %v488 = vld [vmem:[#allocation5 + $0x138] sm:$0xff]
        %v489 = vld [vmem:[#allocation5 + $0x140] sm:$0xff]
        %v490 = vld [vmem:[#allocation5 + $0x148] sm:$0xff]
        %v491 = vld [vmem:[#allocation5 + $0x150] sm:$0xff]
        %v492 = vld [vmem:[#allocation5 + $0x158] sm:$0xff]
        %v493 = vld [vmem:[#allocation5 + $0x160] sm:$0xff]
        %v494 = vld [vmem:[#allocation5 + $0x168] sm:$0xff]
        %v495 = vld [vmem:[#allocation5 + $0x170] sm:$0xff]
        %v496 = vld [vmem:[#allocation5 + $0x178] sm:$0xff]
        %v497 = vld [vmem:[#allocation5 + $0x180] sm:$0xff]
        %v498 = vld [vmem:[#allocation5 + $0x188] sm:$0xff]
        %v499 = vld [vmem:[#allocation5 + $0x190] sm:$0xff]
        %v500 = vld [vmem:[#allocation5 + $0x198] sm:$0xff]
        %v501 = vld [vmem:[#allocation5 + $0x1a0] sm:$0xff]
        %v502 = vld [vmem:[#allocation5 + $0x1a8] sm:$0xff]
        %v503 = vld [vmem:[#allocation5 + $0x1b0] sm:$0xff]
        %v504 = vld [vmem:[#allocation5 + $0x1b8] sm:$0xff]
        %v505 = vld [vmem:[#allocation5 + $0x1c0] sm:$0xff]
        %v506 = vld [vmem:[#allocation5 + $0x1c8] sm:$0xff]
        %v507 = vld [vmem:[#allocation5 + $0x1d0] sm:$0xff]
        %v508 = vld [vmem:[#allocation5 + $0x1d8] sm:$0xff]
        %v509 = vld [vmem:[#allocation5 + $0x1e0] sm:$0xff]
        %v510 = vld [vmem:[#allocation5 + $0x1e8] sm:$0xff]
        %v511 = vld [vmem:[#allocation5 + $0x1f0] sm:$0xff]
        %v512 = vld [vmem:[#allocation5 + $0x1f8] sm:$0xff]
        %v513 = vld [vmem:[#allocation5 + $0x200] sm:$0xff]
        %v514 = vld [vmem:[#allocation5 + $0x208] sm:$0xff]
        %v515 = vld [vmem:[#allocation5 + $0x210] sm:$0xff]
        %v516 = vld [vmem:[#allocation5 + $0x218] sm:$0xff]
        %v517 = vld [vmem:[#allocation5 + $0x220] sm:$0xff]
        %v518 = vld [vmem:[#allocation5 + $0x228] sm:$0xff]
        %v519 = vld [vmem:[#allocation5 + $0x230] sm:$0xff]
        %v520 = vld [vmem:[#allocation5 + $0x238] sm:$0xff]
        %v521 = vld [vmem:[#allocation5 + $0x240] sm:$0xff]
        %v522 = vld [vmem:[#allocation5 + $0x248] sm:$0xff]
        %v523 = vld [vmem:[#allocation5 + $0x250] sm:$0xff]
        %v524 = vld [vmem:[#allocation5 + $0x258] sm:$0xff]
        %v525 = vld [vmem:[#allocation5 + $0x260] sm:$0xff]
        %v526 = vld [vmem:[#allocation5 + $0x268] sm:$0xff]
        %v527 = vld [vmem:[#allocation5 + $0x270] sm:$0xff]
        %v528 = vld [vmem:[#allocation5 + $0x278] sm:$0xff]
        %v529 = vld [vmem:[#allocation5 + $0x280] sm:$0xff]
        %v530 = vld [vmem:[#allocation5 + $0x288] sm:$0xff]
        %v531 = vld [vmem:[#allocation5 + $0x290] sm:$0xff]
        %v532 = vld [vmem:[#allocation5 + $0x298] sm:$0xff]
        %v533 = vld [vmem:[#allocation5 + $0x2a0] sm:$0xff]
        %v534 = vld [vmem:[#allocation5 + $0x2a8] sm:$0xff]
        %v535 = vld [vmem:[#allocation5 + $0x2b0] sm:$0xff]
        %v536 = vld [vmem:[#allocation5 + $0x2b8] sm:$0xff]
        %v537 = vld [vmem:[#allocation5 + $0x2c0] sm:$0xff]
        %v538 = vld [vmem:[#allocation5 + $0x2c8] sm:$0xff]
        %v539 = vld [vmem:[#allocation5 + $0x2d0] sm:$0xff]
        %v540 = vld [vmem:[#allocation5 + $0x2d8] sm:$0xff]
        %v541 = vld [vmem:[#allocation5 + $0x2e0] sm:$0xff]
        %v542 = vld [vmem:[#allocation5 + $0x2e8] sm:$0xff]
        %v543 = vld [vmem:[#allocation5 + $0x2f0] sm:$0xff]
        %v544 = vld [vmem:[#allocation5 + $0x2f8] sm:$0xff]
        %v545 = vld [vmem:[#allocation5 + $0x300] sm:$0xff]
        %v546 = vld [vmem:[#allocation5 + $0x308] sm:$0xff]
        %v547 = vld [vmem:[#allocation5 + $0x310] sm:$0xff]
        %v548 = vld [vmem:[#allocation5 + $0x318] sm:$0xff]
        %v549 = vld [vmem:[#allocation5 + $0x320] sm:$0xff]
        %v550 = vld [vmem:[#allocation5 + $0x328] sm:$0xff]
        %v551 = vld [vmem:[#allocation5 + $0x330] sm:$0xff]
        %v552 = vld [vmem:[#allocation5 + $0x338] sm:$0xff]
        %v553 = vld [vmem:[#allocation5 + $0x340] sm:$0xff]
        %v554 = vld [vmem:[#allocation5 + $0x348] sm:$0xff]
        %v555 = vld [vmem:[#allocation5 + $0x350] sm:$0xff]
        %v556 = vld [vmem:[#allocation5 + $0x358] sm:$0xff]
        %v557 = vld [vmem:[#allocation5 + $0x360] sm:$0xff]
        %v558 = vld [vmem:[#allocation5 + $0x368] sm:$0xff]
        %v559 = vld [vmem:[#allocation5 + $0x370] sm:$0xff]
        %v560 = vld [vmem:[#allocation5 + $0x378] sm:$0xff]
        %v561 = vld [vmem:[#allocation5 + $0x380] sm:$0xff]
        %v562 = vld [vmem:[#allocation5 + $0x388] sm:$0xff]
        %v563 = vld [vmem:[#allocation5 + $0x390] sm:$0xff]
        %v564 = vld [vmem:[#allocation5 + $0x398] sm:$0xff]
        %v565 = vld [vmem:[#allocation5 + $0x3a0] sm:$0xff]
        %v566 = vld [vmem:[#allocation5 + $0x3a8] sm:$0xff]
        %v567 = vld [vmem:[#allocation5 + $0x3b0] sm:$0xff]
        %v568 = vld [vmem:[#allocation5 + $0x3b8] sm:$0xff]
        %v569 = vld [vmem:[#allocation5 + $0x3c0] sm:$0xff]
        %v570 = vld [vmem:[#allocation5 + $0x3c8] sm:$0xff]
        %v571 = vld [vmem:[#allocation5 + $0x3d0] sm:$0xff]
        %v572 = vld [vmem:[#allocation5 + $0x3d8] sm:$0xff]
        %v573 = vld [vmem:[#allocation5 + $0x3e0] sm:$0xff]
        %v574 = vld [vmem:[#allocation5 + $0x3e8] sm:$0xff]
        %v575 = vld [vmem:[#allocation5 + $0x3f0] sm:$0xff]
        %v576 = vld [vmem:[#allocation5 + $0x3f8] sm:$0xff]
        %v577 = vld [vmem:[#allocation7] sm:$0xf]
        %v579 = vperm.slane %v577, 0
        %v580 = vperm.slane %v577, 1
        %v581 = vperm.slane %v577, 2
        %v582 = vperm.slane %v577, 3
        %v715 = vunpack.c.l.b16 %v449
        %v716 = vunpack.c.h.b16 %v449
        %v717 = vunpack.c.l.b16 %v450
        %v718 = vunpack.c.h.b16 %v450
        %v719 = vunpack.c.l.b16 %v451
        %v720 = vunpack.c.h.b16 %v451
        %v721 = vunpack.c.l.b16 %v452
        %v722 = vunpack.c.h.b16 %v452
        %v723 = vunpack.c.l.b16 %v453
        %v724 = vunpack.c.h.b16 %v453
        %v725 = vunpack.c.l.b16 %v454
        %v726 = vunpack.c.h.b16 %v454
        %v727 = vunpack.c.l.b16 %v455
        %v728 = vunpack.c.h.b16 %v455
        %v729 = vunpack.c.l.b16 %v456
        %v730 = vunpack.c.h.b16 %v456
        %v731 = vunpack.c.l.b16 %v457
        %v732 = vunpack.c.h.b16 %v457
        %v733 = vunpack.c.l.b16 %v458
        %v734 = vunpack.c.h.b16 %v458
        %v735 = vunpack.c.l.b16 %v459
        %v736 = vunpack.c.h.b16 %v459
        %v737 = vunpack.c.l.b16 %v460
        %v738 = vunpack.c.h.b16 %v460
        %v739 = vunpack.c.l.b16 %v461
        %v740 = vunpack.c.h.b16 %v461
        %v741 = vunpack.c.l.b16 %v462
        %v742 = vunpack.c.h.b16 %v462
        %v743 = vunpack.c.l.b16 %v463
        %v744 = vunpack.c.h.b16 %v463
        %v745 = vunpack.c.l.b16 %v464
        %v746 = vunpack.c.h.b16 %v464
        %v747 = vunpack.c.l.b16 %v465
        %v748 = vunpack.c.h.b16 %v465
        %v749 = vunpack.c.l.b16 %v466
        %v750 = vunpack.c.h.b16 %v466
        %v751 = vunpack.c.l.b16 %v467
        %v752 = vunpack.c.h.b16 %v467
        %v753 = vunpack.c.l.b16 %v468
        %v754 = vunpack.c.h.b16 %v468
        %v755 = vunpack.c.l.b16 %v469
        %v756 = vunpack.c.h.b16 %v469
        %v757 = vunpack.c.l.b16 %v470
        %v758 = vunpack.c.h.b16 %v470
        %v759 = vunpack.c.l.b16 %v471
        %v760 = vunpack.c.h.b16 %v471
        %v761 = vunpack.c.l.b16 %v472
        %v762 = vunpack.c.h.b16 %v472
        %v763 = vunpack.c.l.b16 %v473
        %v764 = vunpack.c.h.b16 %v473
        %v765 = vunpack.c.l.b16 %v474
        %v766 = vunpack.c.h.b16 %v474
        %v767 = vunpack.c.l.b16 %v475
        %v768 = vunpack.c.h.b16 %v475
        %v769 = vunpack.c.l.b16 %v476
        %v770 = vunpack.c.h.b16 %v476
        %v771 = vunpack.c.l.b16 %v477
        %v772 = vunpack.c.h.b16 %v477
        %v773 = vunpack.c.l.b16 %v478
        %v774 = vunpack.c.h.b16 %v478
        %v775 = vunpack.c.l.b16 %v479
        %v776 = vunpack.c.h.b16 %v479
        %v777 = vunpack.c.l.b16 %v480
        %v778 = vunpack.c.h.b16 %v480
        %v779 = vunpack.c.l.b16 %v481
        %v780 = vunpack.c.h.b16 %v481
        %v781 = vunpack.c.l.b16 %v482
        %v782 = vunpack.c.h.b16 %v482
        %v783 = vunpack.c.l.b16 %v483
        %v784 = vunpack.c.h.b16 %v483
        %v785 = vunpack.c.l.b16 %v484
        %v786 = vunpack.c.h.b16 %v484
        %v787 = vunpack.c.l.b16 %v485
        %v788 = vunpack.c.h.b16 %v485
        %v789 = vunpack.c.l.b16 %v486
        %v790 = vunpack.c.h.b16 %v486
        %v791 = vunpack.c.l.b16 %v487
        %v792 = vunpack.c.h.b16 %v487
        %v793 = vunpack.c.l.b16 %v488
        %v794 = vunpack.c.h.b16 %v488
        %v795 = vunpack.c.l.b16 %v489
        %v796 = vunpack.c.h.b16 %v489
        %v797 = vunpack.c.l.b16 %v490
        %v798 = vunpack.c.h.b16 %v490
        %v799 = vunpack.c.l.b16 %v491
        %v800 = vunpack.c.h.b16 %v491
        %v801 = vunpack.c.l.b16 %v492
        %v802 = vunpack.c.h.b16 %v492
        %v803 = vunpack.c.l.b16 %v493
        %v804 = vunpack.c.h.b16 %v493
        %v805 = vunpack.c.l.b16 %v494
        %v806 = vunpack.c.h.b16 %v494
        %v807 = vunpack.c.l.b16 %v495
        %v808 = vunpack.c.h.b16 %v495
        %v809 = vunpack.c.l.b16 %v496
        %v810 = vunpack.c.h.b16 %v496
        %v811 = vunpack.c.l.b16 %v497
        %v812 = vunpack.c.h.b16 %v497
        %v813 = vunpack.c.l.b16 %v498
        %v814 = vunpack.c.h.b16 %v498
        %v815 = vunpack.c.l.b16 %v499
        %v816 = vunpack.c.h.b16 %v499
        %v817 = vunpack.c.l.b16 %v500
        %v818 = vunpack.c.h.b16 %v500
        %v819 = vunpack.c.l.b16 %v501
        %v820 = vunpack.c.h.b16 %v501
        %v821 = vunpack.c.l.b16 %v502
        %v822 = vunpack.c.h.b16 %v502
        %v823 = vunpack.c.l.b16 %v503
        %v824 = vunpack.c.h.b16 %v503
        %v825 = vunpack.c.l.b16 %v504
        %v826 = vunpack.c.h.b16 %v504
        %v827 = vunpack.c.l.b16 %v505
        %v828 = vunpack.c.h.b16 %v505
        %v829 = vunpack.c.l.b16 %v506
        %v830 = vunpack.c.h.b16 %v506
        %v831 = vunpack.c.l.b16 %v507
        %v832 = vunpack.c.h.b16 %v507
        %v833 = vunpack.c.l.b16 %v508
        %v834 = vunpack.c.h.b16 %v508
        %v835 = vunpack.c.l.b16 %v509
        %v836 = vunpack.c.h.b16 %v509
        %v837 = vunpack.c.l.b16 %v510
        %v838 = vunpack.c.h.b16 %v510
        %v839 = vunpack.c.l.b16 %v511
        %v840 = vunpack.c.h.b16 %v511
        %v841 = vunpack.c.l.b16 %v512
        %v842 = vunpack.c.h.b16 %v512
        %v843 = vunpack.c.l.b16 %v513
        %v844 = vunpack.c.h.b16 %v513
        %v845 = vunpack.c.l.b16 %v514
        %v846 = vunpack.c.h.b16 %v514
        %v847 = vunpack.c.l.b16 %v515
        %v848 = vunpack.c.h.b16 %v515
        %v849 = vunpack.c.l.b16 %v516
        %v850 = vunpack.c.h.b16 %v516
        %v851 = vunpack.c.l.b16 %v517
        %v852 = vunpack.c.h.b16 %v517
        %v853 = vunpack.c.l.b16 %v518
        %v854 = vunpack.c.h.b16 %v518
        %v855 = vunpack.c.l.b16 %v519
        %v856 = vunpack.c.h.b16 %v519
        %v857 = vunpack.c.l.b16 %v520
        %v858 = vunpack.c.h.b16 %v520
        %v859 = vunpack.c.l.b16 %v521
        %v860 = vunpack.c.h.b16 %v521
        %v861 = vunpack.c.l.b16 %v522
        %v862 = vunpack.c.h.b16 %v522
        %v863 = vunpack.c.l.b16 %v523
        %v864 = vunpack.c.h.b16 %v523
        %v865 = vunpack.c.l.b16 %v524
        %v866 = vunpack.c.h.b16 %v524
        %v867 = vunpack.c.l.b16 %v525
        %v868 = vunpack.c.h.b16 %v525
        %v869 = vunpack.c.l.b16 %v526
        %v870 = vunpack.c.h.b16 %v526
        %v871 = vunpack.c.l.b16 %v527
        %v872 = vunpack.c.h.b16 %v527
        %v873 = vunpack.c.l.b16 %v528
        %v874 = vunpack.c.h.b16 %v528
        %v875 = vunpack.c.l.b16 %v529
        %v876 = vunpack.c.h.b16 %v529
        %v877 = vunpack.c.l.b16 %v530
        %v878 = vunpack.c.h.b16 %v530
        %v879 = vunpack.c.l.b16 %v531
        %v880 = vunpack.c.h.b16 %v531
        %v881 = vunpack.c.l.b16 %v532
        %v882 = vunpack.c.h.b16 %v532
        %v883 = vunpack.c.l.b16 %v533
        %v884 = vunpack.c.h.b16 %v533
        %v885 = vunpack.c.l.b16 %v534
        %v886 = vunpack.c.h.b16 %v534
        %v887 = vunpack.c.l.b16 %v535
        %v888 = vunpack.c.h.b16 %v535
        %v889 = vunpack.c.l.b16 %v536
        %v890 = vunpack.c.h.b16 %v536
        %v891 = vunpack.c.l.b16 %v537
        %v892 = vunpack.c.h.b16 %v537
        %v893 = vunpack.c.l.b16 %v538
        %v894 = vunpack.c.h.b16 %v538
        %v895 = vunpack.c.l.b16 %v539
        %v896 = vunpack.c.h.b16 %v539
        %v897 = vunpack.c.l.b16 %v540
        %v898 = vunpack.c.h.b16 %v540
        %v899 = vunpack.c.l.b16 %v541
        %v900 = vunpack.c.h.b16 %v541
        %v901 = vunpack.c.l.b16 %v542
        %v902 = vunpack.c.h.b16 %v542
        %v903 = vunpack.c.l.b16 %v543
        %v904 = vunpack.c.h.b16 %v543
        %v905 = vunpack.c.l.b16 %v544
        %v906 = vunpack.c.h.b16 %v544
        %v907 = vunpack.c.l.b16 %v545
        %v908 = vunpack.c.h.b16 %v545
        %v909 = vunpack.c.l.b16 %v546
        %v910 = vunpack.c.h.b16 %v546
        %v911 = vunpack.c.l.b16 %v547
        %v912 = vunpack.c.h.b16 %v547
        %v913 = vunpack.c.l.b16 %v548
        %v914 = vunpack.c.h.b16 %v548
        %v915 = vunpack.c.l.b16 %v549
        %v916 = vunpack.c.h.b16 %v549
        %v917 = vunpack.c.l.b16 %v550
        %v918 = vunpack.c.h.b16 %v550
        %v919 = vunpack.c.l.b16 %v551
        %v920 = vunpack.c.h.b16 %v551
        %v921 = vunpack.c.l.b16 %v552
        %v922 = vunpack.c.h.b16 %v552
        %v923 = vunpack.c.l.b16 %v553
        %v924 = vunpack.c.h.b16 %v553
        %v925 = vunpack.c.l.b16 %v554
        %v926 = vunpack.c.h.b16 %v554
        %v927 = vunpack.c.l.b16 %v555
        %v928 = vunpack.c.h.b16 %v555
        %v929 = vunpack.c.l.b16 %v556
        %v930 = vunpack.c.h.b16 %v556
        %v931 = vunpack.c.l.b16 %v557
        %v932 = vunpack.c.h.b16 %v557
        %v933 = vunpack.c.l.b16 %v558
        %v934 = vunpack.c.h.b16 %v558
        %v935 = vunpack.c.l.b16 %v559
        %v936 = vunpack.c.h.b16 %v559
        %v937 = vunpack.c.l.b16 %v560
        %v938 = vunpack.c.h.b16 %v560
        %v939 = vunpack.c.l.b16 %v561
        %v940 = vunpack.c.h.b16 %v561
        %v941 = vunpack.c.l.b16 %v562
        %v942 = vunpack.c.h.b16 %v562
        %v943 = vunpack.c.l.b16 %v563
        %v944 = vunpack.c.h.b16 %v563
        %v945 = vunpack.c.l.b16 %v564
        %v946 = vunpack.c.h.b16 %v564
        %v947 = vunpack.c.l.b16 %v565
        %v948 = vunpack.c.h.b16 %v565
        %v949 = vunpack.c.l.b16 %v566
        %v950 = vunpack.c.h.b16 %v566
        %v951 = vunpack.c.l.b16 %v567
        %v952 = vunpack.c.h.b16 %v567
        %v953 = vunpack.c.l.b16 %v568
        %v954 = vunpack.c.h.b16 %v568
        %v955 = vunpack.c.l.b16 %v569
        %v956 = vunpack.c.h.b16 %v569
        %v957 = vunpack.c.l.b16 %v570
        %v958 = vunpack.c.h.b16 %v570
        %v959 = vunpack.c.l.b16 %v571
        %v960 = vunpack.c.h.b16 %v571
        %v961 = vunpack.c.l.b16 %v572
        %v962 = vunpack.c.h.b16 %v572
        %v963 = vunpack.c.l.b16 %v573
        %v964 = vunpack.c.h.b16 %v573
        %v965 = vunpack.c.l.b16 %v574
        %v966 = vunpack.c.h.b16 %v574
        %v967 = vunpack.c.l.b16 %v575
        %v968 = vunpack.c.h.b16 %v575
        %v969 = vunpack.c.l.b16 %v576
        %v970 = vunpack.c.h.b16 %v576
        %v971 = vpack.c.b16 %v719, %v715
        %v972 = vpack.c.b16 %v720, %v716
        %v973 = vpack.c.b16 %v721, %v717
        %v974 = vpack.c.b16 %v722, %v718
        %v975 = vpack.c.b16 %v727, %v723
        %v976 = vpack.c.b16 %v728, %v724
        %v977 = vpack.c.b16 %v729, %v725
        %v978 = vpack.c.b16 %v730, %v726
        %v979 = vpack.c.b16 %v735, %v731
        %v980 = vpack.c.b16 %v736, %v732
        %v981 = vpack.c.b16 %v737, %v733
        %v982 = vpack.c.b16 %v738, %v734
        %v983 = vpack.c.b16 %v743, %v739
        %v984 = vpack.c.b16 %v744, %v740
        %v985 = vpack.c.b16 %v745, %v741
        %v986 = vpack.c.b16 %v746, %v742
        %v987 = vpack.c.b16 %v751, %v747
        %v988 = vpack.c.b16 %v752, %v748
        %v989 = vpack.c.b16 %v753, %v749
        %v990 = vpack.c.b16 %v754, %v750
        %v991 = vpack.c.b16 %v759, %v755
        %v992 = vpack.c.b16 %v760, %v756
        %v993 = vpack.c.b16 %v761, %v757
        %v994 = vpack.c.b16 %v762, %v758
        %v995 = vpack.c.b16 %v767, %v763
        %v996 = vpack.c.b16 %v768, %v764
        %v997 = vpack.c.b16 %v769, %v765
        %v998 = vpack.c.b16 %v770, %v766
        %v999 = vpack.c.b16 %v775, %v771
        %v1000 = vpack.c.b16 %v776, %v772
        %v1001 = vpack.c.b16 %v777, %v773
        %v1002 = vpack.c.b16 %v778, %v774
        %v1003 = vpack.c.b16 %v783, %v779
        %v1004 = vpack.c.b16 %v784, %v780
        %v1005 = vpack.c.b16 %v785, %v781
        %v1006 = vpack.c.b16 %v786, %v782
        %v1007 = vpack.c.b16 %v791, %v787
        %v1008 = vpack.c.b16 %v792, %v788
        %v1009 = vpack.c.b16 %v793, %v789
        %v1010 = vpack.c.b16 %v794, %v790
        %v1011 = vpack.c.b16 %v799, %v795
        %v1012 = vpack.c.b16 %v800, %v796
        %v1013 = vpack.c.b16 %v801, %v797
        %v1014 = vpack.c.b16 %v802, %v798
        %v1015 = vpack.c.b16 %v807, %v803
        %v1016 = vpack.c.b16 %v808, %v804
        %v1017 = vpack.c.b16 %v809, %v805
        %v1018 = vpack.c.b16 %v810, %v806
        %v1019 = vpack.c.b16 %v815, %v811
        %v1020 = vpack.c.b16 %v816, %v812
        %v1021 = vpack.c.b16 %v817, %v813
        %v1022 = vpack.c.b16 %v818, %v814
        %v1023 = vpack.c.b16 %v823, %v819
        %v1024 = vpack.c.b16 %v824, %v820
        %v1025 = vpack.c.b16 %v825, %v821
        %v1026 = vpack.c.b16 %v826, %v822
        %v1027 = vpack.c.b16 %v831, %v827
        %v1028 = vpack.c.b16 %v832, %v828
        %v1029 = vpack.c.b16 %v833, %v829
        %v1030 = vpack.c.b16 %v834, %v830
        %v1031 = vpack.c.b16 %v839, %v835
        %v1032 = vpack.c.b16 %v840, %v836
        %v1033 = vpack.c.b16 %v841, %v837
        %v1034 = vpack.c.b16 %v842, %v838
        %v1035 = vpack.c.b16 %v847, %v843
        %v1036 = vpack.c.b16 %v848, %v844
        %v1037 = vpack.c.b16 %v849, %v845
        %v1038 = vpack.c.b16 %v850, %v846
        %v1039 = vpack.c.b16 %v855, %v851
        %v1040 = vpack.c.b16 %v856, %v852
        %v1041 = vpack.c.b16 %v857, %v853
        %v1042 = vpack.c.b16 %v858, %v854
        %v1043 = vpack.c.b16 %v863, %v859
        %v1044 = vpack.c.b16 %v864, %v860
        %v1045 = vpack.c.b16 %v865, %v861
        %v1046 = vpack.c.b16 %v866, %v862
        %v1047 = vpack.c.b16 %v871, %v867
        %v1048 = vpack.c.b16 %v872, %v868
        %v1049 = vpack.c.b16 %v873, %v869
        %v1050 = vpack.c.b16 %v874, %v870
        %v1051 = vpack.c.b16 %v879, %v875
        %v1052 = vpack.c.b16 %v880, %v876
        %v1053 = vpack.c.b16 %v881, %v877
        %v1054 = vpack.c.b16 %v882, %v878
        %v1055 = vpack.c.b16 %v887, %v883
        %v1056 = vpack.c.b16 %v888, %v884
        %v1057 = vpack.c.b16 %v889, %v885
        %v1058 = vpack.c.b16 %v890, %v886
        %v1059 = vpack.c.b16 %v895, %v891
        %v1060 = vpack.c.b16 %v896, %v892
        %v1061 = vpack.c.b16 %v897, %v893
        %v1062 = vpack.c.b16 %v898, %v894
        %v1063 = vpack.c.b16 %v903, %v899
        %v1064 = vpack.c.b16 %v904, %v900
        %v1065 = vpack.c.b16 %v905, %v901
        %v1066 = vpack.c.b16 %v906, %v902
        %v1067 = vpack.c.b16 %v911, %v907
        %v1068 = vpack.c.b16 %v912, %v908
        %v1069 = vpack.c.b16 %v913, %v909
        %v1070 = vpack.c.b16 %v914, %v910
        %v1071 = vpack.c.b16 %v919, %v915
        %v1072 = vpack.c.b16 %v920, %v916
        %v1073 = vpack.c.b16 %v921, %v917
        %v1074 = vpack.c.b16 %v922, %v918
        %v1075 = vpack.c.b16 %v927, %v923
        %v1076 = vpack.c.b16 %v928, %v924
        %v1077 = vpack.c.b16 %v929, %v925
        %v1078 = vpack.c.b16 %v930, %v926
        %v1079 = vpack.c.b16 %v935, %v931
        %v1080 = vpack.c.b16 %v936, %v932
        %v1081 = vpack.c.b16 %v937, %v933
        %v1082 = vpack.c.b16 %v938, %v934
        %v1083 = vpack.c.b16 %v943, %v939
        %v1084 = vpack.c.b16 %v944, %v940
        %v1085 = vpack.c.b16 %v945, %v941
        %v1086 = vpack.c.b16 %v946, %v942
        %v1087 = vpack.c.b16 %v951, %v947
        %v1088 = vpack.c.b16 %v952, %v948
        %v1089 = vpack.c.b16 %v953, %v949
        %v1090 = vpack.c.b16 %v954, %v950
        %v1091 = vpack.c.b16 %v959, %v955
        %v1092 = vpack.c.b16 %v960, %v956
        %v1093 = vpack.c.b16 %v961, %v957
        %v1094 = vpack.c.b16 %v962, %v958
        %v1095 = vpack.c.b16 %v967, %v963
        %v1096 = vpack.c.b16 %v968, %v964
        %v1097 = vpack.c.b16 %v969, %v965
        %v1098 = vpack.c.b16 %v970, %v966
        %1227 = vmatpush.bf16.msra.mxu0 %v999
        %1228 = vmatpush.bf16.msra.mxu0 %v995
        %1229 = vmatpush.bf16.msra.mxu0 %v991
        %1230 = vmatpush.bf16.msra.mxu0 %v987
        %1231 = vmatpush.bf16.msra.mxu0 %v983
        %1232 = vmatpush.bf16.msra.mxu0 %v979
        %1233 = vmatpush.bf16.msra.mxu0 %v975
        %1234 = vmatpush.bf16.msra.mxu0 %v971
        %1235 = vmatmul.bf16.gmra.mxu0 %v385
        %v1236 = vpop.f32.mrf.mxu0
        %v1237 = vadd.f32 %v579, %v1236
        %v1238 = vpop.f32.mrf.mxu0
        %v1239 = vadd.f32 %v579, %v1238
        %1240 = vmatmul.bf16.gmra.mxu0 %v389
        %v1241 = vpop.f32.mrf.mxu0
        %v1242 = vadd.f32 %v579, %v1241
        %v1243 = vpop.f32.mrf.mxu0
        %v1244 = vadd.f32 %v579, %v1243
        %1245 = vmatmul.bf16.gmra.mxu0 %v393
        %v1246 = vpop.f32.mrf.mxu0
        %v1247 = vadd.f32 %v579, %v1246
        %v1248 = vpop.f32.mrf.mxu0
        %v1249 = vadd.f32 %v579, %v1248
        %1250 = vmatmul.bf16.gmra.mxu0 %v397
        %v1251 = vpop.f32.mrf.mxu0
        %v1252 = vadd.f32 %v579, %v1251
        %v1253 = vpop.f32.mrf.mxu0
        %v1254 = vadd.f32 %v579, %v1253
        %1255 = vmatmul.bf16.gmra.mxu0 %v401
        %v1256 = vpop.f32.mrf.mxu0
        %v1257 = vadd.f32 %v579, %v1256
        %v1258 = vpop.f32.mrf.mxu0
        %v1259 = vadd.f32 %v579, %v1258
        %1260 = vmatmul.bf16.gmra.mxu0 %v405
        %v1261 = vpop.f32.mrf.mxu0
        %v1262 = vadd.f32 %v579, %v1261
        %v1263 = vpop.f32.mrf.mxu0
        %v1264 = vadd.f32 %v579, %v1263
        %1265 = vmatmul.bf16.gmra.mxu0 %v409
        %v1266 = vpop.f32.mrf.mxu0
        %v1267 = vadd.f32 %v579, %v1266
        %v1268 = vpop.f32.mrf.mxu0
        %v1269 = vadd.f32 %v579, %v1268
        %1270 = vmatmul.bf16.gmra.mxu0 %v413
        %v1271 = vpop.f32.mrf.mxu0
        %v1272 = vadd.f32 %v579, %v1271
        %v1273 = vpop.f32.mrf.mxu0
        %v1274 = vadd.f32 %v579, %v1273
        %1275 = vmatmul.bf16.gmra.mxu0 %v417
        %v1276 = vpop.f32.mrf.mxu0
        %v1277 = vadd.f32 %v579, %v1276
        %v1278 = vpop.f32.mrf.mxu0
        %v1279 = vadd.f32 %v579, %v1278
        %1280 = vmatmul.bf16.gmra.mxu0 %v421
        %v1281 = vpop.f32.mrf.mxu0
        %v1282 = vadd.f32 %v579, %v1281
        %v1283 = vpop.f32.mrf.mxu0
        %v1284 = vadd.f32 %v579, %v1283
        %1285 = vmatmul.bf16.gmra.mxu0 %v425
        %v1286 = vpop.f32.mrf.mxu0
        %v1287 = vadd.f32 %v579, %v1286
        %v1288 = vpop.f32.mrf.mxu0
        %v1289 = vadd.f32 %v579, %v1288
        %1290 = vmatmul.bf16.gmra.mxu0 %v429
        %v1291 = vpop.f32.mrf.mxu0
        %v1292 = vadd.f32 %v579, %v1291
        %v1293 = vpop.f32.mrf.mxu0
        %v1294 = vadd.f32 %v579, %v1293
        %1295 = vmatmul.bf16.gmra.mxu0 %v433
        %v1296 = vpop.f32.mrf.mxu0
        %v1297 = vadd.f32 %v579, %v1296
        %v1298 = vpop.f32.mrf.mxu0
        %v1299 = vadd.f32 %v579, %v1298
        %1300 = vmatmul.bf16.gmra.mxu0 %v437
        %v1301 = vpop.f32.mrf.mxu0
        %v1302 = vadd.f32 %v579, %v1301
        %v1303 = vpop.f32.mrf.mxu0
        %v1304 = vadd.f32 %v579, %v1303
        %1305 = vmatmul.bf16.gmra.mxu0 %v441
        %v1306 = vpop.f32.mrf.mxu0
        %v1307 = vadd.f32 %v579, %v1306
        %v1308 = vpop.f32.mrf.mxu0
        %v1309 = vadd.f32 %v579, %v1308
        %1310 = vmatmul.bf16.gmra.mxu0 %v445
        %v1311 = vpop.f32.mrf.mxu0
        %v1312 = vadd.f32 %v579, %v1311
        %v1313 = vpop.f32.mrf.mxu0
        %v1314 = vadd.f32 %v579, %v1313
        %1315 = vdwg.mxu0
        %1316 = vmatpush.bf16.msra.mxu0 %v1031
        %1317 = vmatpush.bf16.msra.mxu0 %v1027
        %1318 = vmatpush.bf16.msra.mxu0 %v1023
        %1319 = vmatpush.bf16.msra.mxu0 %v1019
        %1320 = vmatpush.bf16.msra.mxu0 %v1015
        %1321 = vmatpush.bf16.msra.mxu0 %v1011
        %1322 = vmatpush.bf16.msra.mxu0 %v1007
        %1323 = vmatpush.bf16.msra.mxu0 %v1003
        %1324 = vmatmul.bf16.gmra.mxu0 %v386
        %v1325 = vpop.f32.mrf.mxu0
        %v1326 = vadd.f32 %v1237, %v1325
        %v1327 = vpop.f32.mrf.mxu0
        %v1328 = vadd.f32 %v1239, %v1327
        %1329 = vmatmul.bf16.gmra.mxu0 %v390
        %v1330 = vpop.f32.mrf.mxu0
        %v1331 = vadd.f32 %v1242, %v1330
        %v1332 = vpop.f32.mrf.mxu0
        %v1333 = vadd.f32 %v1244, %v1332
        %1334 = vmatmul.bf16.gmra.mxu0 %v394
        %v1335 = vpop.f32.mrf.mxu0
        %v1336 = vadd.f32 %v1247, %v1335
        %v1337 = vpop.f32.mrf.mxu0
        %v1338 = vadd.f32 %v1249, %v1337
        %1339 = vmatmul.bf16.gmra.mxu0 %v398
        %v1340 = vpop.f32.mrf.mxu0
        %v1341 = vadd.f32 %v1252, %v1340
        %v1342 = vpop.f32.mrf.mxu0
        %v1343 = vadd.f32 %v1254, %v1342
        %1344 = vmatmul.bf16.gmra.mxu0 %v402
        %v1345 = vpop.f32.mrf.mxu0
        %v1346 = vadd.f32 %v1257, %v1345
        %v1347 = vpop.f32.mrf.mxu0
        %v1348 = vadd.f32 %v1259, %v1347
        %1349 = vmatmul.bf16.gmra.mxu0 %v406
        %v1350 = vpop.f32.mrf.mxu0
        %v1351 = vadd.f32 %v1262, %v1350
        %v1352 = vpop.f32.mrf.mxu0
        %v1353 = vadd.f32 %v1264, %v1352
        %1354 = vmatmul.bf16.gmra.mxu0 %v410
        %v1355 = vpop.f32.mrf.mxu0
        %v1356 = vadd.f32 %v1267, %v1355
        %v1357 = vpop.f32.mrf.mxu0
        %v1358 = vadd.f32 %v1269, %v1357
        %1359 = vmatmul.bf16.gmra.mxu0 %v414
        %v1360 = vpop.f32.mrf.mxu0
        %v1361 = vadd.f32 %v1272, %v1360
        %v1362 = vpop.f32.mrf.mxu0
        %v1363 = vadd.f32 %v1274, %v1362
        %1364 = vmatmul.bf16.gmra.mxu0 %v418
        %v1365 = vpop.f32.mrf.mxu0
        %v1366 = vadd.f32 %v1277, %v1365
        %v1367 = vpop.f32.mrf.mxu0
        %v1368 = vadd.f32 %v1279, %v1367
        %1369 = vmatmul.bf16.gmra.mxu0 %v422
        %v1370 = vpop.f32.mrf.mxu0
        %v1371 = vadd.f32 %v1282, %v1370
        %v1372 = vpop.f32.mrf.mxu0
        %v1373 = vadd.f32 %v1284, %v1372
        %1374 = vmatmul.bf16.gmra.mxu0 %v426
        %v1375 = vpop.f32.mrf.mxu0
        %v1376 = vadd.f32 %v1287, %v1375
        %v1377 = vpop.f32.mrf.mxu0
        %v1378 = vadd.f32 %v1289, %v1377
        %1379 = vmatmul.bf16.gmra.mxu0 %v430
        %v1380 = vpop.f32.mrf.mxu0
        %v1381 = vadd.f32 %v1292, %v1380
        %v1382 = vpop.f32.mrf.mxu0
        %v1383 = vadd.f32 %v1294, %v1382
        %1384 = vmatmul.bf16.gmra.mxu0 %v434
        %v1385 = vpop.f32.mrf.mxu0
        %v1386 = vadd.f32 %v1297, %v1385
        %v1387 = vpop.f32.mrf.mxu0
        %v1388 = vadd.f32 %v1299, %v1387
        %1389 = vmatmul.bf16.gmra.mxu0 %v438
        %v1390 = vpop.f32.mrf.mxu0
        %v1391 = vadd.f32 %v1302, %v1390
        %v1392 = vpop.f32.mrf.mxu0
        %v1393 = vadd.f32 %v1304, %v1392
        %1394 = vmatmul.bf16.gmra.mxu0 %v442
        %v1395 = vpop.f32.mrf.mxu0
        %v1396 = vadd.f32 %v1307, %v1395
        %v1397 = vpop.f32.mrf.mxu0
        %v1398 = vadd.f32 %v1309, %v1397
        %1399 = vmatmul.bf16.gmra.mxu0 %v446
        %v1400 = vpop.f32.mrf.mxu0
        %v1401 = vadd.f32 %v1312, %v1400
        %v1402 = vpop.f32.mrf.mxu0
        %v1403 = vadd.f32 %v1314, %v1402
        %1404 = vdwg.mxu0
        %1405 = vmatpush.bf16.msra.mxu0 %v1063
        %1406 = vmatpush.bf16.msra.mxu0 %v1059
        %1407 = vmatpush.bf16.msra.mxu0 %v1055
        %1408 = vmatpush.bf16.msra.mxu0 %v1051
        %1409 = vmatpush.bf16.msra.mxu0 %v1047
        %1410 = vmatpush.bf16.msra.mxu0 %v1043
        %1411 = vmatpush.bf16.msra.mxu0 %v1039
        %1412 = vmatpush.bf16.msra.mxu0 %v1035
        %1413 = vmatmul.bf16.gmra.mxu0 %v387
        %v1414 = vpop.f32.mrf.mxu0
        %v1415 = vadd.f32 %v1326, %v1414
        %v1416 = vpop.f32.mrf.mxu0
        %v1417 = vadd.f32 %v1328, %v1416
        %1418 = vmatmul.bf16.gmra.mxu0 %v391
        %v1419 = vpop.f32.mrf.mxu0
        %v1420 = vadd.f32 %v1331, %v1419
        %v1421 = vpop.f32.mrf.mxu0
        %v1422 = vadd.f32 %v1333, %v1421
        %1423 = vmatmul.bf16.gmra.mxu0 %v395
        %v1424 = vpop.f32.mrf.mxu0
        %v1425 = vadd.f32 %v1336, %v1424
        %v1426 = vpop.f32.mrf.mxu0
        %v1427 = vadd.f32 %v1338, %v1426
        %1428 = vmatmul.bf16.gmra.mxu0 %v399
        %v1429 = vpop.f32.mrf.mxu0
        %v1430 = vadd.f32 %v1341, %v1429
        %v1431 = vpop.f32.mrf.mxu0
        %v1432 = vadd.f32 %v1343, %v1431
        %1433 = vmatmul.bf16.gmra.mxu0 %v403
        %v1434 = vpop.f32.mrf.mxu0
        %v1435 = vadd.f32 %v1346, %v1434
        %v1436 = vpop.f32.mrf.mxu0
        %v1437 = vadd.f32 %v1348, %v1436
        %1438 = vmatmul.bf16.gmra.mxu0 %v407
        %v1439 = vpop.f32.mrf.mxu0
        %v1440 = vadd.f32 %v1351, %v1439
        %v1441 = vpop.f32.mrf.mxu0
        %v1442 = vadd.f32 %v1353, %v1441
        %1443 = vmatmul.bf16.gmra.mxu0 %v411
        %v1444 = vpop.f32.mrf.mxu0
        %v1445 = vadd.f32 %v1356, %v1444
        %v1446 = vpop.f32.mrf.mxu0
        %v1447 = vadd.f32 %v1358, %v1446
        %1448 = vmatmul.bf16.gmra.mxu0 %v415
        %v1449 = vpop.f32.mrf.mxu0
        %v1450 = vadd.f32 %v1361, %v1449
        %v1451 = vpop.f32.mrf.mxu0
        %v1452 = vadd.f32 %v1363, %v1451
        %1453 = vmatmul.bf16.gmra.mxu0 %v419
        %v1454 = vpop.f32.mrf.mxu0
        %v1455 = vadd.f32 %v1366, %v1454
        %v1456 = vpop.f32.mrf.mxu0
        %v1457 = vadd.f32 %v1368, %v1456
        %1458 = vmatmul.bf16.gmra.mxu0 %v423
        %v1459 = vpop.f32.mrf.mxu0
        %v1460 = vadd.f32 %v1371, %v1459
        %v1461 = vpop.f32.mrf.mxu0
        %v1462 = vadd.f32 %v1373, %v1461
        %1463 = vmatmul.bf16.gmra.mxu0 %v427
        %v1464 = vpop.f32.mrf.mxu0
        %v1465 = vadd.f32 %v1376, %v1464
        %v1466 = vpop.f32.mrf.mxu0
        %v1467 = vadd.f32 %v1378, %v1466
        %1468 = vmatmul.bf16.gmra.mxu0 %v431
        %v1469 = vpop.f32.mrf.mxu0
        %v1470 = vadd.f32 %v1381, %v1469
        %v1471 = vpop.f32.mrf.mxu0
        %v1472 = vadd.f32 %v1383, %v1471
        %1473 = vmatmul.bf16.gmra.mxu0 %v435
        %v1474 = vpop.f32.mrf.mxu0
        %v1475 = vadd.f32 %v1386, %v1474
        %v1476 = vpop.f32.mrf.mxu0
        %v1477 = vadd.f32 %v1388, %v1476
        %1478 = vmatmul.bf16.gmra.mxu0 %v439
        %v1479 = vpop.f32.mrf.mxu0
        %v1480 = vadd.f32 %v1391, %v1479
        %v1481 = vpop.f32.mrf.mxu0
        %v1482 = vadd.f32 %v1393, %v1481
        %1483 = vmatmul.bf16.gmra.mxu0 %v443
        %v1484 = vpop.f32.mrf.mxu0
        %v1485 = vadd.f32 %v1396, %v1484
        %v1486 = vpop.f32.mrf.mxu0
        %v1487 = vadd.f32 %v1398, %v1486
        %1488 = vmatmul.bf16.gmra.mxu0 %v447
        %v1489 = vpop.f32.mrf.mxu0
        %v1490 = vadd.f32 %v1401, %v1489
        %v1491 = vpop.f32.mrf.mxu0
        %v1492 = vadd.f32 %v1403, %v1491
        %1493 = vdwg.mxu0
        %1494 = vmatpush.bf16.msra.mxu0 %v1095
        %1495 = vmatpush.bf16.msra.mxu0 %v1091
        %1496 = vmatpush.bf16.msra.mxu0 %v1087
        %1497 = vmatpush.bf16.msra.mxu0 %v1083
        %1498 = vmatpush.bf16.msra.mxu0 %v1079
        %1499 = vmatpush.bf16.msra.mxu0 %v1075
        %1500 = vmatpush.bf16.msra.mxu0 %v1071
        %1501 = vmatpush.bf16.msra.mxu0 %v1067
        %1502 = vmatmul.bf16.gmra.mxu0 %v388
        %v1503 = vpop.f32.mrf.mxu0
        %v1504 = vadd.f32 %v1415, %v1503
        %v1505 = vpop.f32.mrf.mxu0
        %v1506 = vadd.f32 %v1417, %v1505
        %1507 = vmatmul.bf16.gmra.mxu0 %v392
        %v1508 = vpop.f32.mrf.mxu0
        %v1509 = vadd.f32 %v1420, %v1508
        %v1510 = vpop.f32.mrf.mxu0
        %v1511 = vadd.f32 %v1422, %v1510
        %1512 = vmatmul.bf16.gmra.mxu0 %v396
        %v1513 = vpop.f32.mrf.mxu0
        %v1514 = vadd.f32 %v1425, %v1513
        %v1515 = vpop.f32.mrf.mxu0
        %v1516 = vadd.f32 %v1427, %v1515
        %1517 = vmatmul.bf16.gmra.mxu0 %v400
        %v1518 = vpop.f32.mrf.mxu0
        %v1519 = vadd.f32 %v1430, %v1518
        %v1520 = vpop.f32.mrf.mxu0
        %v1521 = vadd.f32 %v1432, %v1520
        %1522 = vmatmul.bf16.gmra.mxu0 %v404
        %v1523 = vpop.f32.mrf.mxu0
        %v1524 = vadd.f32 %v1435, %v1523
        %v1525 = vpop.f32.mrf.mxu0
        %v1526 = vadd.f32 %v1437, %v1525
        %1527 = vmatmul.bf16.gmra.mxu0 %v408
        %v1528 = vpop.f32.mrf.mxu0
        %v1529 = vadd.f32 %v1440, %v1528
        %v1530 = vpop.f32.mrf.mxu0
        %v1531 = vadd.f32 %v1442, %v1530
        %1532 = vmatmul.bf16.gmra.mxu0 %v412
        %v1533 = vpop.f32.mrf.mxu0
        %v1534 = vadd.f32 %v1445, %v1533
        %v1535 = vpop.f32.mrf.mxu0
        %v1536 = vadd.f32 %v1447, %v1535
        %1537 = vmatmul.bf16.gmra.mxu0 %v416
        %v1538 = vpop.f32.mrf.mxu0
        %v1539 = vadd.f32 %v1450, %v1538
        %v1540 = vpop.f32.mrf.mxu0
        %v1541 = vadd.f32 %v1452, %v1540
        %1542 = vmatmul.bf16.gmra.mxu0 %v420
        %v1543 = vpop.f32.mrf.mxu0
        %v1544 = vadd.f32 %v1455, %v1543
        %v1545 = vpop.f32.mrf.mxu0
        %v1546 = vadd.f32 %v1457, %v1545
        %1547 = vmatmul.bf16.gmra.mxu0 %v424
        %v1548 = vpop.f32.mrf.mxu0
        %v1549 = vadd.f32 %v1460, %v1548
        %v1550 = vpop.f32.mrf.mxu0
        %v1551 = vadd.f32 %v1462, %v1550
        %1552 = vmatmul.bf16.gmra.mxu0 %v428
        %v1553 = vpop.f32.mrf.mxu0
        %v1554 = vadd.f32 %v1465, %v1553
        %v1555 = vpop.f32.mrf.mxu0
        %v1556 = vadd.f32 %v1467, %v1555
        %1557 = vmatmul.bf16.gmra.mxu0 %v432
        %v1558 = vpop.f32.mrf.mxu0
        %v1559 = vadd.f32 %v1470, %v1558
        %v1560 = vpop.f32.mrf.mxu0
        %v1561 = vadd.f32 %v1472, %v1560
        %1562 = vmatmul.bf16.gmra.mxu0 %v436
        %v1563 = vpop.f32.mrf.mxu0
        %v1564 = vadd.f32 %v1475, %v1563
        %v1565 = vpop.f32.mrf.mxu0
        %v1566 = vadd.f32 %v1477, %v1565
        %1567 = vmatmul.bf16.gmra.mxu0 %v440
        %v1568 = vpop.f32.mrf.mxu0
        %v1569 = vadd.f32 %v1480, %v1568
        %v1570 = vpop.f32.mrf.mxu0
        %v1571 = vadd.f32 %v1482, %v1570
        %1572 = vmatmul.bf16.gmra.mxu0 %v444
        %v1573 = vpop.f32.mrf.mxu0
        %v1574 = vadd.f32 %v1485, %v1573
        %v1575 = vpop.f32.mrf.mxu0
        %v1576 = vadd.f32 %v1487, %v1575
        %1577 = vmatmul.bf16.gmra.mxu0 %v448
        %v1578 = vpop.f32.mrf.mxu0
        %v1579 = vadd.f32 %v1490, %v1578
        %v1580 = vpop.f32.mrf.mxu0
        %v1581 = vadd.f32 %v1492, %v1580
        %1582 = vdwg.mxu0
        %1583 = vmatpush.bf16.msra.mxu0 %v1000
        %1584 = vmatpush.bf16.msra.mxu0 %v996
        %1585 = vmatpush.bf16.msra.mxu0 %v992
        %1586 = vmatpush.bf16.msra.mxu0 %v988
        %1587 = vmatpush.bf16.msra.mxu0 %v984
        %1588 = vmatpush.bf16.msra.mxu0 %v980
        %1589 = vmatpush.bf16.msra.mxu0 %v976
        %1590 = vmatpush.bf16.msra.mxu0 %v972
        %1591 = vmatmul.bf16.gmra.mxu0 %v385
        %v1592 = vpop.f32.mrf.mxu0
        %v1593 = vadd.f32 %v580, %v1592
        %v1594 = vpop.f32.mrf.mxu0
        %v1595 = vadd.f32 %v580, %v1594
        %1596 = vmatmul.bf16.gmra.mxu0 %v389
        %v1597 = vpop.f32.mrf.mxu0
        %v1598 = vadd.f32 %v580, %v1597
        %v1599 = vpop.f32.mrf.mxu0
        %v1600 = vadd.f32 %v580, %v1599
        %1601 = vmatmul.bf16.gmra.mxu0 %v393
        %v1602 = vpop.f32.mrf.mxu0
        %v1603 = vadd.f32 %v580, %v1602
        %v1604 = vpop.f32.mrf.mxu0
        %v1605 = vadd.f32 %v580, %v1604
        %1606 = vmatmul.bf16.gmra.mxu0 %v397
        %v1607 = vpop.f32.mrf.mxu0
        %v1608 = vadd.f32 %v580, %v1607
        %v1609 = vpop.f32.mrf.mxu0
        %v1610 = vadd.f32 %v580, %v1609
        %1611 = vmatmul.bf16.gmra.mxu0 %v401
        %v1612 = vpop.f32.mrf.mxu0
        %v1613 = vadd.f32 %v580, %v1612
        %v1614 = vpop.f32.mrf.mxu0
        %v1615 = vadd.f32 %v580, %v1614
        %1616 = vmatmul.bf16.gmra.mxu0 %v405
        %v1617 = vpop.f32.mrf.mxu0
        %v1618 = vadd.f32 %v580, %v1617
        %v1619 = vpop.f32.mrf.mxu0
        %v1620 = vadd.f32 %v580, %v1619
        %1621 = vmatmul.bf16.gmra.mxu0 %v409
        %v1622 = vpop.f32.mrf.mxu0
        %v1623 = vadd.f32 %v580, %v1622
        %v1624 = vpop.f32.mrf.mxu0
        %v1625 = vadd.f32 %v580, %v1624
        %1626 = vmatmul.bf16.gmra.mxu0 %v413
        %v1627 = vpop.f32.mrf.mxu0
        %v1628 = vadd.f32 %v580, %v1627
        %v1629 = vpop.f32.mrf.mxu0
        %v1630 = vadd.f32 %v580, %v1629
        %1631 = vmatmul.bf16.gmra.mxu0 %v417
        %v1632 = vpop.f32.mrf.mxu0
        %v1633 = vadd.f32 %v580, %v1632
        %v1634 = vpop.f32.mrf.mxu0
        %v1635 = vadd.f32 %v580, %v1634
        %1636 = vmatmul.bf16.gmra.mxu0 %v421
        %v1637 = vpop.f32.mrf.mxu0
        %v1638 = vadd.f32 %v580, %v1637
        %v1639 = vpop.f32.mrf.mxu0
        %v1640 = vadd.f32 %v580, %v1639
        %1641 = vmatmul.bf16.gmra.mxu0 %v425
        %v1642 = vpop.f32.mrf.mxu0
        %v1643 = vadd.f32 %v580, %v1642
        %v1644 = vpop.f32.mrf.mxu0
        %v1645 = vadd.f32 %v580, %v1644
        %1646 = vmatmul.bf16.gmra.mxu0 %v429
        %v1647 = vpop.f32.mrf.mxu0
        %v1648 = vadd.f32 %v580, %v1647
        %v1649 = vpop.f32.mrf.mxu0
        %v1650 = vadd.f32 %v580, %v1649
        %1651 = vmatmul.bf16.gmra.mxu0 %v433
        %v1652 = vpop.f32.mrf.mxu0
        %v1653 = vadd.f32 %v580, %v1652
        %v1654 = vpop.f32.mrf.mxu0
        %v1655 = vadd.f32 %v580, %v1654
        %1656 = vmatmul.bf16.gmra.mxu0 %v437
        %v1657 = vpop.f32.mrf.mxu0
        %v1658 = vadd.f32 %v580, %v1657
        %v1659 = vpop.f32.mrf.mxu0
        %v1660 = vadd.f32 %v580, %v1659
        %1661 = vmatmul.bf16.gmra.mxu0 %v441
        %v1662 = vpop.f32.mrf.mxu0
        %v1663 = vadd.f32 %v580, %v1662
        %v1664 = vpop.f32.mrf.mxu0
        %v1665 = vadd.f32 %v580, %v1664
        %1666 = vmatmul.bf16.gmra.mxu0 %v445
        %v1667 = vpop.f32.mrf.mxu0
        %v1668 = vadd.f32 %v580, %v1667
        %v1669 = vpop.f32.mrf.mxu0
        %v1670 = vadd.f32 %v580, %v1669
        %1671 = vdwg.mxu0
        %1672 = vmatpush.bf16.msra.mxu0 %v1032
        %1673 = vmatpush.bf16.msra.mxu0 %v1028
        %1674 = vmatpush.bf16.msra.mxu0 %v1024
        %1675 = vmatpush.bf16.msra.mxu0 %v1020
        %1676 = vmatpush.bf16.msra.mxu0 %v1016
        %1677 = vmatpush.bf16.msra.mxu0 %v1012
        %1678 = vmatpush.bf16.msra.mxu0 %v1008
        %1679 = vmatpush.bf16.msra.mxu0 %v1004
        %1680 = vmatmul.bf16.gmra.mxu0 %v386
        %v1681 = vpop.f32.mrf.mxu0
        %v1682 = vadd.f32 %v1593, %v1681
        %v1683 = vpop.f32.mrf.mxu0
        %v1684 = vadd.f32 %v1595, %v1683
        %1685 = vmatmul.bf16.gmra.mxu0 %v390
        %v1686 = vpop.f32.mrf.mxu0
        %v1687 = vadd.f32 %v1598, %v1686
        %v1688 = vpop.f32.mrf.mxu0
        %v1689 = vadd.f32 %v1600, %v1688
        %1690 = vmatmul.bf16.gmra.mxu0 %v394
        %v1691 = vpop.f32.mrf.mxu0
        %v1692 = vadd.f32 %v1603, %v1691
        %v1693 = vpop.f32.mrf.mxu0
        %v1694 = vadd.f32 %v1605, %v1693
        %1695 = vmatmul.bf16.gmra.mxu0 %v398
        %v1696 = vpop.f32.mrf.mxu0
        %v1697 = vadd.f32 %v1608, %v1696
        %v1698 = vpop.f32.mrf.mxu0
        %v1699 = vadd.f32 %v1610, %v1698
        %1700 = vmatmul.bf16.gmra.mxu0 %v402
        %v1701 = vpop.f32.mrf.mxu0
        %v1702 = vadd.f32 %v1613, %v1701
        %v1703 = vpop.f32.mrf.mxu0
        %v1704 = vadd.f32 %v1615, %v1703
        %1705 = vmatmul.bf16.gmra.mxu0 %v406
        %v1706 = vpop.f32.mrf.mxu0
        %v1707 = vadd.f32 %v1618, %v1706
        %v1708 = vpop.f32.mrf.mxu0
        %v1709 = vadd.f32 %v1620, %v1708
        %1710 = vmatmul.bf16.gmra.mxu0 %v410
        %v1711 = vpop.f32.mrf.mxu0
        %v1712 = vadd.f32 %v1623, %v1711
        %v1713 = vpop.f32.mrf.mxu0
        %v1714 = vadd.f32 %v1625, %v1713
        %1715 = vmatmul.bf16.gmra.mxu0 %v414
        %v1716 = vpop.f32.mrf.mxu0
        %v1717 = vadd.f32 %v1628, %v1716
        %v1718 = vpop.f32.mrf.mxu0
        %v1719 = vadd.f32 %v1630, %v1718
        %1720 = vmatmul.bf16.gmra.mxu0 %v418
        %v1721 = vpop.f32.mrf.mxu0
        %v1722 = vadd.f32 %v1633, %v1721
        %v1723 = vpop.f32.mrf.mxu0
        %v1724 = vadd.f32 %v1635, %v1723
        %1725 = vmatmul.bf16.gmra.mxu0 %v422
        %v1726 = vpop.f32.mrf.mxu0
        %v1727 = vadd.f32 %v1638, %v1726
        %v1728 = vpop.f32.mrf.mxu0
        %v1729 = vadd.f32 %v1640, %v1728
        %1730 = vmatmul.bf16.gmra.mxu0 %v426
        %v1731 = vpop.f32.mrf.mxu0
        %v1732 = vadd.f32 %v1643, %v1731
        %v1733 = vpop.f32.mrf.mxu0
        %v1734 = vadd.f32 %v1645, %v1733
        %1735 = vmatmul.bf16.gmra.mxu0 %v430
        %v1736 = vpop.f32.mrf.mxu0
        %v1737 = vadd.f32 %v1648, %v1736
        %v1738 = vpop.f32.mrf.mxu0
        %v1739 = vadd.f32 %v1650, %v1738
        %1740 = vmatmul.bf16.gmra.mxu0 %v434
        %v1741 = vpop.f32.mrf.mxu0
        %v1742 = vadd.f32 %v1653, %v1741
        %v1743 = vpop.f32.mrf.mxu0
        %v1744 = vadd.f32 %v1655, %v1743
        %1745 = vmatmul.bf16.gmra.mxu0 %v438
        %v1746 = vpop.f32.mrf.mxu0
        %v1747 = vadd.f32 %v1658, %v1746
        %v1748 = vpop.f32.mrf.mxu0
        %v1749 = vadd.f32 %v1660, %v1748
        %1750 = vmatmul.bf16.gmra.mxu0 %v442
        %v1751 = vpop.f32.mrf.mxu0
        %v1752 = vadd.f32 %v1663, %v1751
        %v1753 = vpop.f32.mrf.mxu0
        %v1754 = vadd.f32 %v1665, %v1753
        %1755 = vmatmul.bf16.gmra.mxu0 %v446
        %v1756 = vpop.f32.mrf.mxu0
        %v1757 = vadd.f32 %v1668, %v1756
        %v1758 = vpop.f32.mrf.mxu0
        %v1759 = vadd.f32 %v1670, %v1758
        %1760 = vdwg.mxu0
        %1761 = vmatpush.bf16.msra.mxu0 %v1064
        %1762 = vmatpush.bf16.msra.mxu0 %v1060
        %1763 = vmatpush.bf16.msra.mxu0 %v1056
        %1764 = vmatpush.bf16.msra.mxu0 %v1052
        %1765 = vmatpush.bf16.msra.mxu0 %v1048
        %1766 = vmatpush.bf16.msra.mxu0 %v1044
        %1767 = vmatpush.bf16.msra.mxu0 %v1040
        %1768 = vmatpush.bf16.msra.mxu0 %v1036
        %1769 = vmatmul.bf16.gmra.mxu0 %v387
        %v1770 = vpop.f32.mrf.mxu0
        %v1771 = vadd.f32 %v1682, %v1770
        %v1772 = vpop.f32.mrf.mxu0
        %v1773 = vadd.f32 %v1684, %v1772
        %1774 = vmatmul.bf16.gmra.mxu0 %v391
        %v1775 = vpop.f32.mrf.mxu0
        %v1776 = vadd.f32 %v1687, %v1775
        %v1777 = vpop.f32.mrf.mxu0
        %v1778 = vadd.f32 %v1689, %v1777
        %1779 = vmatmul.bf16.gmra.mxu0 %v395
        %v1780 = vpop.f32.mrf.mxu0
        %v1781 = vadd.f32 %v1692, %v1780
        %v1782 = vpop.f32.mrf.mxu0
        %v1783 = vadd.f32 %v1694, %v1782
        %1784 = vmatmul.bf16.gmra.mxu0 %v399
        %v1785 = vpop.f32.mrf.mxu0
        %v1786 = vadd.f32 %v1697, %v1785
        %v1787 = vpop.f32.mrf.mxu0
        %v1788 = vadd.f32 %v1699, %v1787
        %1789 = vmatmul.bf16.gmra.mxu0 %v403
        %v1790 = vpop.f32.mrf.mxu0
        %v1791 = vadd.f32 %v1702, %v1790
        %v1792 = vpop.f32.mrf.mxu0
        %v1793 = vadd.f32 %v1704, %v1792
        %1794 = vmatmul.bf16.gmra.mxu0 %v407
        %v1795 = vpop.f32.mrf.mxu0
        %v1796 = vadd.f32 %v1707, %v1795
        %v1797 = vpop.f32.mrf.mxu0
        %v1798 = vadd.f32 %v1709, %v1797
        %1799 = vmatmul.bf16.gmra.mxu0 %v411
        %v1800 = vpop.f32.mrf.mxu0
        %v1801 = vadd.f32 %v1712, %v1800
        %v1802 = vpop.f32.mrf.mxu0
        %v1803 = vadd.f32 %v1714, %v1802
        %1804 = vmatmul.bf16.gmra.mxu0 %v415
        %v1805 = vpop.f32.mrf.mxu0
        %v1806 = vadd.f32 %v1717, %v1805
        %v1807 = vpop.f32.mrf.mxu0
        %v1808 = vadd.f32 %v1719, %v1807
        %1809 = vmatmul.bf16.gmra.mxu0 %v419
        %v1810 = vpop.f32.mrf.mxu0
        %v1811 = vadd.f32 %v1722, %v1810
        %v1812 = vpop.f32.mrf.mxu0
        %v1813 = vadd.f32 %v1724, %v1812
        %1814 = vmatmul.bf16.gmra.mxu0 %v423
        %v1815 = vpop.f32.mrf.mxu0
        %v1816 = vadd.f32 %v1727, %v1815
        %v1817 = vpop.f32.mrf.mxu0
        %v1818 = vadd.f32 %v1729, %v1817
        %1819 = vmatmul.bf16.gmra.mxu0 %v427
        %v1820 = vpop.f32.mrf.mxu0
        %v1821 = vadd.f32 %v1732, %v1820
        %v1822 = vpop.f32.mrf.mxu0
        %v1823 = vadd.f32 %v1734, %v1822
        %1824 = vmatmul.bf16.gmra.mxu0 %v431
        %v1825 = vpop.f32.mrf.mxu0
        %v1826 = vadd.f32 %v1737, %v1825
        %v1827 = vpop.f32.mrf.mxu0
        %v1828 = vadd.f32 %v1739, %v1827
        %1829 = vmatmul.bf16.gmra.mxu0 %v435
        %v1830 = vpop.f32.mrf.mxu0
        %v1831 = vadd.f32 %v1742, %v1830
        %v1832 = vpop.f32.mrf.mxu0
        %v1833 = vadd.f32 %v1744, %v1832
        %1834 = vmatmul.bf16.gmra.mxu0 %v439
        %v1835 = vpop.f32.mrf.mxu0
        %v1836 = vadd.f32 %v1747, %v1835
        %v1837 = vpop.f32.mrf.mxu0
        %v1838 = vadd.f32 %v1749, %v1837
        %1839 = vmatmul.bf16.gmra.mxu0 %v443
        %v1840 = vpop.f32.mrf.mxu0
        %v1841 = vadd.f32 %v1752, %v1840
        %v1842 = vpop.f32.mrf.mxu0
        %v1843 = vadd.f32 %v1754, %v1842
        %1844 = vmatmul.bf16.gmra.mxu0 %v447
        %v1845 = vpop.f32.mrf.mxu0
        %v1846 = vadd.f32 %v1757, %v1845
        %v1847 = vpop.f32.mrf.mxu0
        %v1848 = vadd.f32 %v1759, %v1847
        %1849 = vdwg.mxu0
        %1850 = vmatpush.bf16.msra.mxu0 %v1096
        %1851 = vmatpush.bf16.msra.mxu0 %v1092
        %1852 = vmatpush.bf16.msra.mxu0 %v1088
        %1853 = vmatpush.bf16.msra.mxu0 %v1084
        %1854 = vmatpush.bf16.msra.mxu0 %v1080
        %1855 = vmatpush.bf16.msra.mxu0 %v1076
        %1856 = vmatpush.bf16.msra.mxu0 %v1072
        %1857 = vmatpush.bf16.msra.mxu0 %v1068
        %1858 = vmatmul.bf16.gmra.mxu0 %v388
        %v1859 = vpop.f32.mrf.mxu0
        %v1860 = vadd.f32 %v1771, %v1859
        %v1861 = vpop.f32.mrf.mxu0
        %v1862 = vadd.f32 %v1773, %v1861
        %1863 = vmatmul.bf16.gmra.mxu0 %v392
        %v1864 = vpop.f32.mrf.mxu0
        %v1865 = vadd.f32 %v1776, %v1864
        %v1866 = vpop.f32.mrf.mxu0
        %v1867 = vadd.f32 %v1778, %v1866
        %1868 = vmatmul.bf16.gmra.mxu0 %v396
        %v1869 = vpop.f32.mrf.mxu0
        %v1870 = vadd.f32 %v1781, %v1869
        %v1871 = vpop.f32.mrf.mxu0
        %v1872 = vadd.f32 %v1783, %v1871
        %1873 = vmatmul.bf16.gmra.mxu0 %v400
        %v1874 = vpop.f32.mrf.mxu0
        %v1875 = vadd.f32 %v1786, %v1874
        %v1876 = vpop.f32.mrf.mxu0
        %v1877 = vadd.f32 %v1788, %v1876
        %1878 = vmatmul.bf16.gmra.mxu0 %v404
        %v1879 = vpop.f32.mrf.mxu0
        %v1880 = vadd.f32 %v1791, %v1879
        %v1881 = vpop.f32.mrf.mxu0
        %v1882 = vadd.f32 %v1793, %v1881
        %1883 = vmatmul.bf16.gmra.mxu0 %v408
        %v1884 = vpop.f32.mrf.mxu0
        %v1885 = vadd.f32 %v1796, %v1884
        %v1886 = vpop.f32.mrf.mxu0
        %v1887 = vadd.f32 %v1798, %v1886
        %1888 = vmatmul.bf16.gmra.mxu0 %v412
        %v1889 = vpop.f32.mrf.mxu0
        %v1890 = vadd.f32 %v1801, %v1889
        %v1891 = vpop.f32.mrf.mxu0
        %v1892 = vadd.f32 %v1803, %v1891
        %1893 = vmatmul.bf16.gmra.mxu0 %v416
        %v1894 = vpop.f32.mrf.mxu0
        %v1895 = vadd.f32 %v1806, %v1894
        %v1896 = vpop.f32.mrf.mxu0
        %v1897 = vadd.f32 %v1808, %v1896
        %1898 = vmatmul.bf16.gmra.mxu0 %v420
        %v1899 = vpop.f32.mrf.mxu0
        %v1900 = vadd.f32 %v1811, %v1899
        %v1901 = vpop.f32.mrf.mxu0
        %v1902 = vadd.f32 %v1813, %v1901
        %1903 = vmatmul.bf16.gmra.mxu0 %v424
        %v1904 = vpop.f32.mrf.mxu0
        %v1905 = vadd.f32 %v1816, %v1904
        %v1906 = vpop.f32.mrf.mxu0
        %v1907 = vadd.f32 %v1818, %v1906
        %1908 = vmatmul.bf16.gmra.mxu0 %v428
        %v1909 = vpop.f32.mrf.mxu0
        %v1910 = vadd.f32 %v1821, %v1909
        %v1911 = vpop.f32.mrf.mxu0
        %v1912 = vadd.f32 %v1823, %v1911
        %1913 = vmatmul.bf16.gmra.mxu0 %v432
        %v1914 = vpop.f32.mrf.mxu0
        %v1915 = vadd.f32 %v1826, %v1914
        %v1916 = vpop.f32.mrf.mxu0
        %v1917 = vadd.f32 %v1828, %v1916
        %1918 = vmatmul.bf16.gmra.mxu0 %v436
        %v1919 = vpop.f32.mrf.mxu0
        %v1920 = vadd.f32 %v1831, %v1919
        %v1921 = vpop.f32.mrf.mxu0
        %v1922 = vadd.f32 %v1833, %v1921
        %1923 = vmatmul.bf16.gmra.mxu0 %v440
        %v1924 = vpop.f32.mrf.mxu0
        %v1925 = vadd.f32 %v1836, %v1924
        %v1926 = vpop.f32.mrf.mxu0
        %v1927 = vadd.f32 %v1838, %v1926
        %1928 = vmatmul.bf16.gmra.mxu0 %v444
        %v1929 = vpop.f32.mrf.mxu0
        %v1930 = vadd.f32 %v1841, %v1929
        %v1931 = vpop.f32.mrf.mxu0
        %v1932 = vadd.f32 %v1843, %v1931
        %1933 = vmatmul.bf16.gmra.mxu0 %v448
        %v1934 = vpop.f32.mrf.mxu0
        %v1935 = vadd.f32 %v1846, %v1934
        %v1936 = vpop.f32.mrf.mxu0
        %v1937 = vadd.f32 %v1848, %v1936
        %1938 = vdwg.mxu0
        %1939 = vmatpush.bf16.msra.mxu0 %v1001
        %1940 = vmatpush.bf16.msra.mxu0 %v997
        %1941 = vmatpush.bf16.msra.mxu0 %v993
        %1942 = vmatpush.bf16.msra.mxu0 %v989
        %1943 = vmatpush.bf16.msra.mxu0 %v985
        %1944 = vmatpush.bf16.msra.mxu0 %v981
        %1945 = vmatpush.bf16.msra.mxu0 %v977
        %1946 = vmatpush.bf16.msra.mxu0 %v973
        %1947 = vmatmul.bf16.gmra.mxu0 %v385
        %v1948 = vpop.f32.mrf.mxu0
        %v1949 = vadd.f32 %v581, %v1948
        %v1950 = vpop.f32.mrf.mxu0
        %v1951 = vadd.f32 %v581, %v1950
        %1952 = vmatmul.bf16.gmra.mxu0 %v389
        %v1953 = vpop.f32.mrf.mxu0
        %v1954 = vadd.f32 %v581, %v1953
        %v1955 = vpop.f32.mrf.mxu0
        %v1956 = vadd.f32 %v581, %v1955
        %1957 = vmatmul.bf16.gmra.mxu0 %v393
        %v1958 = vpop.f32.mrf.mxu0
        %v1959 = vadd.f32 %v581, %v1958
        %v1960 = vpop.f32.mrf.mxu0
        %v1961 = vadd.f32 %v581, %v1960
        %1962 = vmatmul.bf16.gmra.mxu0 %v397
        %v1963 = vpop.f32.mrf.mxu0
        %v1964 = vadd.f32 %v581, %v1963
        %v1965 = vpop.f32.mrf.mxu0
        %v1966 = vadd.f32 %v581, %v1965
        %1967 = vmatmul.bf16.gmra.mxu0 %v401
        %v1968 = vpop.f32.mrf.mxu0
        %v1969 = vadd.f32 %v581, %v1968
        %v1970 = vpop.f32.mrf.mxu0
        %v1971 = vadd.f32 %v581, %v1970
        %1972 = vmatmul.bf16.gmra.mxu0 %v405
        %v1973 = vpop.f32.mrf.mxu0
        %v1974 = vadd.f32 %v581, %v1973
        %v1975 = vpop.f32.mrf.mxu0
        %v1976 = vadd.f32 %v581, %v1975
        %1977 = vmatmul.bf16.gmra.mxu0 %v409
        %v1978 = vpop.f32.mrf.mxu0
        %v1979 = vadd.f32 %v581, %v1978
        %v1980 = vpop.f32.mrf.mxu0
        %v1981 = vadd.f32 %v581, %v1980
        %1982 = vmatmul.bf16.gmra.mxu0 %v413
        %v1983 = vpop.f32.mrf.mxu0
        %v1984 = vadd.f32 %v581, %v1983
        %v1985 = vpop.f32.mrf.mxu0
        %v1986 = vadd.f32 %v581, %v1985
        %1987 = vmatmul.bf16.gmra.mxu0 %v417
        %v1988 = vpop.f32.mrf.mxu0
        %v1989 = vadd.f32 %v581, %v1988
        %v1990 = vpop.f32.mrf.mxu0
        %v1991 = vadd.f32 %v581, %v1990
        %1992 = vmatmul.bf16.gmra.mxu0 %v421
        %v1993 = vpop.f32.mrf.mxu0
        %v1994 = vadd.f32 %v581, %v1993
        %v1995 = vpop.f32.mrf.mxu0
        %v1996 = vadd.f32 %v581, %v1995
        %1997 = vmatmul.bf16.gmra.mxu0 %v425
        %v1998 = vpop.f32.mrf.mxu0
        %v1999 = vadd.f32 %v581, %v1998
        %v2000 = vpop.f32.mrf.mxu0
        %v2001 = vadd.f32 %v581, %v2000
        %2002 = vmatmul.bf16.gmra.mxu0 %v429
        %v2003 = vpop.f32.mrf.mxu0
        %v2004 = vadd.f32 %v581, %v2003
        %v2005 = vpop.f32.mrf.mxu0
        %v2006 = vadd.f32 %v581, %v2005
        %2007 = vmatmul.bf16.gmra.mxu0 %v433
        %v2008 = vpop.f32.mrf.mxu0
        %v2009 = vadd.f32 %v581, %v2008
        %v2010 = vpop.f32.mrf.mxu0
        %v2011 = vadd.f32 %v581, %v2010
        %2012 = vmatmul.bf16.gmra.mxu0 %v437
        %v2013 = vpop.f32.mrf.mxu0
        %v2014 = vadd.f32 %v581, %v2013
        %v2015 = vpop.f32.mrf.mxu0
        %v2016 = vadd.f32 %v581, %v2015
        %2017 = vmatmul.bf16.gmra.mxu0 %v441
        %v2018 = vpop.f32.mrf.mxu0
        %v2019 = vadd.f32 %v581, %v2018
        %v2020 = vpop.f32.mrf.mxu0
        %v2021 = vadd.f32 %v581, %v2020
        %2022 = vmatmul.bf16.gmra.mxu0 %v445
        %v2023 = vpop.f32.mrf.mxu0
        %v2024 = vadd.f32 %v581, %v2023
        %v2025 = vpop.f32.mrf.mxu0
        %v2026 = vadd.f32 %v581, %v2025
        %2027 = vdwg.mxu0
        %2028 = vmatpush.bf16.msra.mxu0 %v1033
        %2029 = vmatpush.bf16.msra.mxu0 %v1029
        %2030 = vmatpush.bf16.msra.mxu0 %v1025
        %2031 = vmatpush.bf16.msra.mxu0 %v1021
        %2032 = vmatpush.bf16.msra.mxu0 %v1017
        %2033 = vmatpush.bf16.msra.mxu0 %v1013
        %2034 = vmatpush.bf16.msra.mxu0 %v1009
        %2035 = vmatpush.bf16.msra.mxu0 %v1005
        %2036 = vmatmul.bf16.gmra.mxu0 %v386
        %v2037 = vpop.f32.mrf.mxu0
        %v2038 = vadd.f32 %v1949, %v2037
        %v2039 = vpop.f32.mrf.mxu0
        %v2040 = vadd.f32 %v1951, %v2039
        %2041 = vmatmul.bf16.gmra.mxu0 %v390
        %v2042 = vpop.f32.mrf.mxu0
        %v2043 = vadd.f32 %v1954, %v2042
        %v2044 = vpop.f32.mrf.mxu0
        %v2045 = vadd.f32 %v1956, %v2044
        %2046 = vmatmul.bf16.gmra.mxu0 %v394
        %v2047 = vpop.f32.mrf.mxu0
        %v2048 = vadd.f32 %v1959, %v2047
        %v2049 = vpop.f32.mrf.mxu0
        %v2050 = vadd.f32 %v1961, %v2049
        %2051 = vmatmul.bf16.gmra.mxu0 %v398
        %v2052 = vpop.f32.mrf.mxu0
        %v2053 = vadd.f32 %v1964, %v2052
        %v2054 = vpop.f32.mrf.mxu0
        %v2055 = vadd.f32 %v1966, %v2054
        %2056 = vmatmul.bf16.gmra.mxu0 %v402
        %v2057 = vpop.f32.mrf.mxu0
        %v2058 = vadd.f32 %v1969, %v2057
        %v2059 = vpop.f32.mrf.mxu0
        %v2060 = vadd.f32 %v1971, %v2059
        %2061 = vmatmul.bf16.gmra.mxu0 %v406
        %v2062 = vpop.f32.mrf.mxu0
        %v2063 = vadd.f32 %v1974, %v2062
        %v2064 = vpop.f32.mrf.mxu0
        %v2065 = vadd.f32 %v1976, %v2064
        %2066 = vmatmul.bf16.gmra.mxu0 %v410
        %v2067 = vpop.f32.mrf.mxu0
        %v2068 = vadd.f32 %v1979, %v2067
        %v2069 = vpop.f32.mrf.mxu0
        %v2070 = vadd.f32 %v1981, %v2069
        %2071 = vmatmul.bf16.gmra.mxu0 %v414
        %v2072 = vpop.f32.mrf.mxu0
        %v2073 = vadd.f32 %v1984, %v2072
        %v2074 = vpop.f32.mrf.mxu0
        %v2075 = vadd.f32 %v1986, %v2074
        %2076 = vmatmul.bf16.gmra.mxu0 %v418
        %v2077 = vpop.f32.mrf.mxu0
        %v2078 = vadd.f32 %v1989, %v2077
        %v2079 = vpop.f32.mrf.mxu0
        %v2080 = vadd.f32 %v1991, %v2079
        %2081 = vmatmul.bf16.gmra.mxu0 %v422
        %v2082 = vpop.f32.mrf.mxu0
        %v2083 = vadd.f32 %v1994, %v2082
        %v2084 = vpop.f32.mrf.mxu0
        %v2085 = vadd.f32 %v1996, %v2084
        %2086 = vmatmul.bf16.gmra.mxu0 %v426
        %v2087 = vpop.f32.mrf.mxu0
        %v2088 = vadd.f32 %v1999, %v2087
        %v2089 = vpop.f32.mrf.mxu0
        %v2090 = vadd.f32 %v2001, %v2089
        %2091 = vmatmul.bf16.gmra.mxu0 %v430
        %v2092 = vpop.f32.mrf.mxu0
        %v2093 = vadd.f32 %v2004, %v2092
        %v2094 = vpop.f32.mrf.mxu0
        %v2095 = vadd.f32 %v2006, %v2094
        %2096 = vmatmul.bf16.gmra.mxu0 %v434
        %v2097 = vpop.f32.mrf.mxu0
        %v2098 = vadd.f32 %v2009, %v2097
        %v2099 = vpop.f32.mrf.mxu0
        %v2100 = vadd.f32 %v2011, %v2099
        %2101 = vmatmul.bf16.gmra.mxu0 %v438
        %v2102 = vpop.f32.mrf.mxu0
        %v2103 = vadd.f32 %v2014, %v2102
        %v2104 = vpop.f32.mrf.mxu0
        %v2105 = vadd.f32 %v2016, %v2104
        %2106 = vmatmul.bf16.gmra.mxu0 %v442
        %v2107 = vpop.f32.mrf.mxu0
        %v2108 = vadd.f32 %v2019, %v2107
        %v2109 = vpop.f32.mrf.mxu0
        %v2110 = vadd.f32 %v2021, %v2109
        %2111 = vmatmul.bf16.gmra.mxu0 %v446
        %v2112 = vpop.f32.mrf.mxu0
        %v2113 = vadd.f32 %v2024, %v2112
        %v2114 = vpop.f32.mrf.mxu0
        %v2115 = vadd.f32 %v2026, %v2114
        %2116 = vdwg.mxu0
        %2117 = vmatpush.bf16.msra.mxu0 %v1065
        %2118 = vmatpush.bf16.msra.mxu0 %v1061
        %2119 = vmatpush.bf16.msra.mxu0 %v1057
        %2120 = vmatpush.bf16.msra.mxu0 %v1053
        %2121 = vmatpush.bf16.msra.mxu0 %v1049
        %2122 = vmatpush.bf16.msra.mxu0 %v1045
        %2123 = vmatpush.bf16.msra.mxu0 %v1041
        %2124 = vmatpush.bf16.msra.mxu0 %v1037
        %2125 = vmatmul.bf16.gmra.mxu0 %v387
        %v2126 = vpop.f32.mrf.mxu0
        %v2127 = vadd.f32 %v2038, %v2126
        %v2128 = vpop.f32.mrf.mxu0
        %v2129 = vadd.f32 %v2040, %v2128
        %2130 = vmatmul.bf16.gmra.mxu0 %v391
        %v2131 = vpop.f32.mrf.mxu0
        %v2132 = vadd.f32 %v2043, %v2131
        %v2133 = vpop.f32.mrf.mxu0
        %v2134 = vadd.f32 %v2045, %v2133
        %2135 = vmatmul.bf16.gmra.mxu0 %v395
        %v2136 = vpop.f32.mrf.mxu0
        %v2137 = vadd.f32 %v2048, %v2136
        %v2138 = vpop.f32.mrf.mxu0
        %v2139 = vadd.f32 %v2050, %v2138
        %2140 = vmatmul.bf16.gmra.mxu0 %v399
        %v2141 = vpop.f32.mrf.mxu0
        %v2142 = vadd.f32 %v2053, %v2141
        %v2143 = vpop.f32.mrf.mxu0
        %v2144 = vadd.f32 %v2055, %v2143
        %2145 = vmatmul.bf16.gmra.mxu0 %v403
        %v2146 = vpop.f32.mrf.mxu0
        %v2147 = vadd.f32 %v2058, %v2146
        %v2148 = vpop.f32.mrf.mxu0
        %v2149 = vadd.f32 %v2060, %v2148
        %2150 = vmatmul.bf16.gmra.mxu0 %v407
        %v2151 = vpop.f32.mrf.mxu0
        %v2152 = vadd.f32 %v2063, %v2151
        %v2153 = vpop.f32.mrf.mxu0
        %v2154 = vadd.f32 %v2065, %v2153
        %2155 = vmatmul.bf16.gmra.mxu0 %v411
        %v2156 = vpop.f32.mrf.mxu0
        %v2157 = vadd.f32 %v2068, %v2156
        %v2158 = vpop.f32.mrf.mxu0
        %v2159 = vadd.f32 %v2070, %v2158
        %2160 = vmatmul.bf16.gmra.mxu0 %v415
        %v2161 = vpop.f32.mrf.mxu0
        %v2162 = vadd.f32 %v2073, %v2161
        %v2163 = vpop.f32.mrf.mxu0
        %v2164 = vadd.f32 %v2075, %v2163
        %2165 = vmatmul.bf16.gmra.mxu0 %v419
        %v2166 = vpop.f32.mrf.mxu0
        %v2167 = vadd.f32 %v2078, %v2166
        %v2168 = vpop.f32.mrf.mxu0
        %v2169 = vadd.f32 %v2080, %v2168
        %2170 = vmatmul.bf16.gmra.mxu0 %v423
        %v2171 = vpop.f32.mrf.mxu0
        %v2172 = vadd.f32 %v2083, %v2171
        %v2173 = vpop.f32.mrf.mxu0
        %v2174 = vadd.f32 %v2085, %v2173
        %2175 = vmatmul.bf16.gmra.mxu0 %v427
        %v2176 = vpop.f32.mrf.mxu0
        %v2177 = vadd.f32 %v2088, %v2176
        %v2178 = vpop.f32.mrf.mxu0
        %v2179 = vadd.f32 %v2090, %v2178
        %2180 = vmatmul.bf16.gmra.mxu0 %v431
        %v2181 = vpop.f32.mrf.mxu0
        %v2182 = vadd.f32 %v2093, %v2181
        %v2183 = vpop.f32.mrf.mxu0
        %v2184 = vadd.f32 %v2095, %v2183
        %2185 = vmatmul.bf16.gmra.mxu0 %v435
        %v2186 = vpop.f32.mrf.mxu0
        %v2187 = vadd.f32 %v2098, %v2186
        %v2188 = vpop.f32.mrf.mxu0
        %v2189 = vadd.f32 %v2100, %v2188
        %2190 = vmatmul.bf16.gmra.mxu0 %v439
        %v2191 = vpop.f32.mrf.mxu0
        %v2192 = vadd.f32 %v2103, %v2191
        %v2193 = vpop.f32.mrf.mxu0
        %v2194 = vadd.f32 %v2105, %v2193
        %2195 = vmatmul.bf16.gmra.mxu0 %v443
        %v2196 = vpop.f32.mrf.mxu0
        %v2197 = vadd.f32 %v2108, %v2196
        %v2198 = vpop.f32.mrf.mxu0
        %v2199 = vadd.f32 %v2110, %v2198
        %2200 = vmatmul.bf16.gmra.mxu0 %v447
        %v2201 = vpop.f32.mrf.mxu0
        %v2202 = vadd.f32 %v2113, %v2201
        %v2203 = vpop.f32.mrf.mxu0
        %v2204 = vadd.f32 %v2115, %v2203
        %2205 = vdwg.mxu0
        %2206 = vmatpush.bf16.msra.mxu0 %v1097
        %2207 = vmatpush.bf16.msra.mxu0 %v1093
        %2208 = vmatpush.bf16.msra.mxu0 %v1089
        %2209 = vmatpush.bf16.msra.mxu0 %v1085
        %2210 = vmatpush.bf16.msra.mxu0 %v1081
        %2211 = vmatpush.bf16.msra.mxu0 %v1077
        %2212 = vmatpush.bf16.msra.mxu0 %v1073
        %2213 = vmatpush.bf16.msra.mxu0 %v1069
        %2214 = vmatmul.bf16.gmra.mxu0 %v388
        %v2215 = vpop.f32.mrf.mxu0
        %v2216 = vadd.f32 %v2127, %v2215
        %v2217 = vpop.f32.mrf.mxu0
        %v2218 = vadd.f32 %v2129, %v2217
        %2219 = vmatmul.bf16.gmra.mxu0 %v392
        %v2220 = vpop.f32.mrf.mxu0
        %v2221 = vadd.f32 %v2132, %v2220
        %v2222 = vpop.f32.mrf.mxu0
        %v2223 = vadd.f32 %v2134, %v2222
        %2224 = vmatmul.bf16.gmra.mxu0 %v396
        %v2225 = vpop.f32.mrf.mxu0
        %v2226 = vadd.f32 %v2137, %v2225
        %v2227 = vpop.f32.mrf.mxu0
        %v2228 = vadd.f32 %v2139, %v2227
        %2229 = vmatmul.bf16.gmra.mxu0 %v400
        %v2230 = vpop.f32.mrf.mxu0
        %v2231 = vadd.f32 %v2142, %v2230
        %v2232 = vpop.f32.mrf.mxu0
        %v2233 = vadd.f32 %v2144, %v2232
        %2234 = vmatmul.bf16.gmra.mxu0 %v404
        %v2235 = vpop.f32.mrf.mxu0
        %v2236 = vadd.f32 %v2147, %v2235
        %v2237 = vpop.f32.mrf.mxu0
        %v2238 = vadd.f32 %v2149, %v2237
        %2239 = vmatmul.bf16.gmra.mxu0 %v408
        %v2240 = vpop.f32.mrf.mxu0
        %v2241 = vadd.f32 %v2152, %v2240
        %v2242 = vpop.f32.mrf.mxu0
        %v2243 = vadd.f32 %v2154, %v2242
        %2244 = vmatmul.bf16.gmra.mxu0 %v412
        %v2245 = vpop.f32.mrf.mxu0
        %v2246 = vadd.f32 %v2157, %v2245
        %v2247 = vpop.f32.mrf.mxu0
        %v2248 = vadd.f32 %v2159, %v2247
        %2249 = vmatmul.bf16.gmra.mxu0 %v416
        %v2250 = vpop.f32.mrf.mxu0
        %v2251 = vadd.f32 %v2162, %v2250
        %v2252 = vpop.f32.mrf.mxu0
        %v2253 = vadd.f32 %v2164, %v2252
        %2254 = vmatmul.bf16.gmra.mxu0 %v420
        %v2255 = vpop.f32.mrf.mxu0
        %v2256 = vadd.f32 %v2167, %v2255
        %v2257 = vpop.f32.mrf.mxu0
        %v2258 = vadd.f32 %v2169, %v2257
        %2259 = vmatmul.bf16.gmra.mxu0 %v424
        %v2260 = vpop.f32.mrf.mxu0
        %v2261 = vadd.f32 %v2172, %v2260
        %v2262 = vpop.f32.mrf.mxu0
        %v2263 = vadd.f32 %v2174, %v2262
        %2264 = vmatmul.bf16.gmra.mxu0 %v428
        %v2265 = vpop.f32.mrf.mxu0
        %v2266 = vadd.f32 %v2177, %v2265
        %v2267 = vpop.f32.mrf.mxu0
        %v2268 = vadd.f32 %v2179, %v2267
        %2269 = vmatmul.bf16.gmra.mxu0 %v432
        %v2270 = vpop.f32.mrf.mxu0
        %v2271 = vadd.f32 %v2182, %v2270
        %v2272 = vpop.f32.mrf.mxu0
        %v2273 = vadd.f32 %v2184, %v2272
        %2274 = vmatmul.bf16.gmra.mxu0 %v436
        %v2275 = vpop.f32.mrf.mxu0
        %v2276 = vadd.f32 %v2187, %v2275
        %v2277 = vpop.f32.mrf.mxu0
        %v2278 = vadd.f32 %v2189, %v2277
        %2279 = vmatmul.bf16.gmra.mxu0 %v440
        %v2280 = vpop.f32.mrf.mxu0
        %v2281 = vadd.f32 %v2192, %v2280
        %v2282 = vpop.f32.mrf.mxu0
        %v2283 = vadd.f32 %v2194, %v2282
        %2284 = vmatmul.bf16.gmra.mxu0 %v444
        %v2285 = vpop.f32.mrf.mxu0
        %v2286 = vadd.f32 %v2197, %v2285
        %v2287 = vpop.f32.mrf.mxu0
        %v2288 = vadd.f32 %v2199, %v2287
        %2289 = vmatmul.bf16.gmra.mxu0 %v448
        %v2290 = vpop.f32.mrf.mxu0
        %v2291 = vadd.f32 %v2202, %v2290
        %v2292 = vpop.f32.mrf.mxu0
        %v2293 = vadd.f32 %v2204, %v2292
        %2294 = vdwg.mxu0
        %2295 = vmatpush.bf16.msra.mxu0 %v1002
        %2296 = vmatpush.bf16.msra.mxu0 %v998
        %2297 = vmatpush.bf16.msra.mxu0 %v994
        %2298 = vmatpush.bf16.msra.mxu0 %v990
        %2299 = vmatpush.bf16.msra.mxu0 %v986
        %2300 = vmatpush.bf16.msra.mxu0 %v982
        %2301 = vmatpush.bf16.msra.mxu0 %v978
        %2302 = vmatpush.bf16.msra.mxu0 %v974
        %2303 = vmatmul.bf16.gmra.mxu0 %v385
        %v2304 = vpop.f32.mrf.mxu0
        %v2305 = vadd.f32 %v582, %v2304
        %v2306 = vpop.f32.mrf.mxu0
        %v2307 = vadd.f32 %v582, %v2306
        %2308 = vmatmul.bf16.gmra.mxu0 %v389
        %v2309 = vpop.f32.mrf.mxu0
        %v2310 = vadd.f32 %v582, %v2309
        %v2311 = vpop.f32.mrf.mxu0
        %v2312 = vadd.f32 %v582, %v2311
        %2313 = vmatmul.bf16.gmra.mxu0 %v393
        %v2314 = vpop.f32.mrf.mxu0
        %v2315 = vadd.f32 %v582, %v2314
        %v2316 = vpop.f32.mrf.mxu0
        %v2317 = vadd.f32 %v582, %v2316
        %2318 = vmatmul.bf16.gmra.mxu0 %v397
        %v2319 = vpop.f32.mrf.mxu0
        %v2320 = vadd.f32 %v582, %v2319
        %v2321 = vpop.f32.mrf.mxu0
        %v2322 = vadd.f32 %v582, %v2321
        %2323 = vmatmul.bf16.gmra.mxu0 %v401
        %v2324 = vpop.f32.mrf.mxu0
        %v2325 = vadd.f32 %v582, %v2324
        %v2326 = vpop.f32.mrf.mxu0
        %v2327 = vadd.f32 %v582, %v2326
        %2328 = vmatmul.bf16.gmra.mxu0 %v405
        %v2329 = vpop.f32.mrf.mxu0
        %v2330 = vadd.f32 %v582, %v2329
        %v2331 = vpop.f32.mrf.mxu0
        %v2332 = vadd.f32 %v582, %v2331
        %2333 = vmatmul.bf16.gmra.mxu0 %v409
        %v2334 = vpop.f32.mrf.mxu0
        %v2335 = vadd.f32 %v582, %v2334
        %v2336 = vpop.f32.mrf.mxu0
        %v2337 = vadd.f32 %v582, %v2336
        %2338 = vmatmul.bf16.gmra.mxu0 %v413
        %v2339 = vpop.f32.mrf.mxu0
        %v2340 = vadd.f32 %v582, %v2339
        %v2341 = vpop.f32.mrf.mxu0
        %v2342 = vadd.f32 %v582, %v2341
        %2343 = vmatmul.bf16.gmra.mxu0 %v417
        %v2344 = vpop.f32.mrf.mxu0
        %v2345 = vadd.f32 %v582, %v2344
        %v2346 = vpop.f32.mrf.mxu0
        %v2347 = vadd.f32 %v582, %v2346
        %2348 = vmatmul.bf16.gmra.mxu0 %v421
        %v2349 = vpop.f32.mrf.mxu0
        %v2350 = vadd.f32 %v582, %v2349
        %v2351 = vpop.f32.mrf.mxu0
        %v2352 = vadd.f32 %v582, %v2351
        %2353 = vmatmul.bf16.gmra.mxu0 %v425
        %v2354 = vpop.f32.mrf.mxu0
        %v2355 = vadd.f32 %v582, %v2354
        %v2356 = vpop.f32.mrf.mxu0
        %v2357 = vadd.f32 %v582, %v2356
        %2358 = vmatmul.bf16.gmra.mxu0 %v429
        %v2359 = vpop.f32.mrf.mxu0
        %v2360 = vadd.f32 %v582, %v2359
        %v2361 = vpop.f32.mrf.mxu0
        %v2362 = vadd.f32 %v582, %v2361
        %2363 = vmatmul.bf16.gmra.mxu0 %v433
        %v2364 = vpop.f32.mrf.mxu0
        %v2365 = vadd.f32 %v582, %v2364
        %v2366 = vpop.f32.mrf.mxu0
        %v2367 = vadd.f32 %v582, %v2366
        %2368 = vmatmul.bf16.gmra.mxu0 %v437
        %v2369 = vpop.f32.mrf.mxu0
        %v2370 = vadd.f32 %v582, %v2369
        %v2371 = vpop.f32.mrf.mxu0
        %v2372 = vadd.f32 %v582, %v2371
        %2373 = vmatmul.bf16.gmra.mxu0 %v441
        %v2374 = vpop.f32.mrf.mxu0
        %v2375 = vadd.f32 %v582, %v2374
        %v2376 = vpop.f32.mrf.mxu0
        %v2377 = vadd.f32 %v582, %v2376
        %2378 = vmatmul.bf16.gmra.mxu0 %v445
        %v2379 = vpop.f32.mrf.mxu0
        %v2380 = vadd.f32 %v582, %v2379
        %v2381 = vpop.f32.mrf.mxu0
        %v2382 = vadd.f32 %v582, %v2381
        %2383 = vdwg.mxu0
        %2384 = vmatpush.bf16.msra.mxu0 %v1034
        %2385 = vmatpush.bf16.msra.mxu0 %v1030
        %2386 = vmatpush.bf16.msra.mxu0 %v1026
        %2387 = vmatpush.bf16.msra.mxu0 %v1022
        %2388 = vmatpush.bf16.msra.mxu0 %v1018
        %2389 = vmatpush.bf16.msra.mxu0 %v1014
        %2390 = vmatpush.bf16.msra.mxu0 %v1010
        %2391 = vmatpush.bf16.msra.mxu0 %v1006
        %2392 = vmatmul.bf16.gmra.mxu0 %v386
        %v2393 = vpop.f32.mrf.mxu0
        %v2394 = vadd.f32 %v2305, %v2393
        %v2395 = vpop.f32.mrf.mxu0
        %v2396 = vadd.f32 %v2307, %v2395
        %2397 = vmatmul.bf16.gmra.mxu0 %v390
        %v2398 = vpop.f32.mrf.mxu0
        %v2399 = vadd.f32 %v2310, %v2398
        %v2400 = vpop.f32.mrf.mxu0
        %v2401 = vadd.f32 %v2312, %v2400
        %2402 = vmatmul.bf16.gmra.mxu0 %v394
        %v2403 = vpop.f32.mrf.mxu0
        %v2404 = vadd.f32 %v2315, %v2403
        %v2405 = vpop.f32.mrf.mxu0
        %v2406 = vadd.f32 %v2317, %v2405
        %2407 = vmatmul.bf16.gmra.mxu0 %v398
        %v2408 = vpop.f32.mrf.mxu0
        %v2409 = vadd.f32 %v2320, %v2408
        %v2410 = vpop.f32.mrf.mxu0
        %v2411 = vadd.f32 %v2322, %v2410
        %2412 = vmatmul.bf16.gmra.mxu0 %v402
        %v2413 = vpop.f32.mrf.mxu0
        %v2414 = vadd.f32 %v2325, %v2413
        %v2415 = vpop.f32.mrf.mxu0
        %v2416 = vadd.f32 %v2327, %v2415
        %2417 = vmatmul.bf16.gmra.mxu0 %v406
        %v2418 = vpop.f32.mrf.mxu0
        %v2419 = vadd.f32 %v2330, %v2418
        %v2420 = vpop.f32.mrf.mxu0
        %v2421 = vadd.f32 %v2332, %v2420
        %2422 = vmatmul.bf16.gmra.mxu0 %v410
        %v2423 = vpop.f32.mrf.mxu0
        %v2424 = vadd.f32 %v2335, %v2423
        %v2425 = vpop.f32.mrf.mxu0
        %v2426 = vadd.f32 %v2337, %v2425
        %2427 = vmatmul.bf16.gmra.mxu0 %v414
        %v2428 = vpop.f32.mrf.mxu0
        %v2429 = vadd.f32 %v2340, %v2428
        %v2430 = vpop.f32.mrf.mxu0
        %v2431 = vadd.f32 %v2342, %v2430
        %2432 = vmatmul.bf16.gmra.mxu0 %v418
        %v2433 = vpop.f32.mrf.mxu0
        %v2434 = vadd.f32 %v2345, %v2433
        %v2435 = vpop.f32.mrf.mxu0
        %v2436 = vadd.f32 %v2347, %v2435
        %2437 = vmatmul.bf16.gmra.mxu0 %v422
        %v2438 = vpop.f32.mrf.mxu0
        %v2439 = vadd.f32 %v2350, %v2438
        %v2440 = vpop.f32.mrf.mxu0
        %v2441 = vadd.f32 %v2352, %v2440
        %2442 = vmatmul.bf16.gmra.mxu0 %v426
        %v2443 = vpop.f32.mrf.mxu0
        %v2444 = vadd.f32 %v2355, %v2443
        %v2445 = vpop.f32.mrf.mxu0
        %v2446 = vadd.f32 %v2357, %v2445
        %2447 = vmatmul.bf16.gmra.mxu0 %v430
        %v2448 = vpop.f32.mrf.mxu0
        %v2449 = vadd.f32 %v2360, %v2448
        %v2450 = vpop.f32.mrf.mxu0
        %v2451 = vadd.f32 %v2362, %v2450
        %2452 = vmatmul.bf16.gmra.mxu0 %v434
        %v2453 = vpop.f32.mrf.mxu0
        %v2454 = vadd.f32 %v2365, %v2453
        %v2455 = vpop.f32.mrf.mxu0
        %v2456 = vadd.f32 %v2367, %v2455
        %2457 = vmatmul.bf16.gmra.mxu0 %v438
        %v2458 = vpop.f32.mrf.mxu0
        %v2459 = vadd.f32 %v2370, %v2458
        %v2460 = vpop.f32.mrf.mxu0
        %v2461 = vadd.f32 %v2372, %v2460
        %2462 = vmatmul.bf16.gmra.mxu0 %v442
        %v2463 = vpop.f32.mrf.mxu0
        %v2464 = vadd.f32 %v2375, %v2463
        %v2465 = vpop.f32.mrf.mxu0
        %v2466 = vadd.f32 %v2377, %v2465
        %2467 = vmatmul.bf16.gmra.mxu0 %v446
        %v2468 = vpop.f32.mrf.mxu0
        %v2469 = vadd.f32 %v2380, %v2468
        %v2470 = vpop.f32.mrf.mxu0
        %v2471 = vadd.f32 %v2382, %v2470
        %2472 = vdwg.mxu0
        %2473 = vmatpush.bf16.msra.mxu0 %v1066
        %2474 = vmatpush.bf16.msra.mxu0 %v1062
        %2475 = vmatpush.bf16.msra.mxu0 %v1058
        %2476 = vmatpush.bf16.msra.mxu0 %v1054
        %2477 = vmatpush.bf16.msra.mxu0 %v1050
        %2478 = vmatpush.bf16.msra.mxu0 %v1046
        %2479 = vmatpush.bf16.msra.mxu0 %v1042
        %2480 = vmatpush.bf16.msra.mxu0 %v1038
        %2481 = vmatmul.bf16.gmra.mxu0 %v387
        %v2482 = vpop.f32.mrf.mxu0
        %v2483 = vadd.f32 %v2394, %v2482
        %v2484 = vpop.f32.mrf.mxu0
        %v2485 = vadd.f32 %v2396, %v2484
        %2486 = vmatmul.bf16.gmra.mxu0 %v391
        %v2487 = vpop.f32.mrf.mxu0
        %v2488 = vadd.f32 %v2399, %v2487
        %v2489 = vpop.f32.mrf.mxu0
        %v2490 = vadd.f32 %v2401, %v2489
        %2491 = vmatmul.bf16.gmra.mxu0 %v395
        %v2492 = vpop.f32.mrf.mxu0
        %v2493 = vadd.f32 %v2404, %v2492
        %v2494 = vpop.f32.mrf.mxu0
        %v2495 = vadd.f32 %v2406, %v2494
        %2496 = vmatmul.bf16.gmra.mxu0 %v399
        %v2497 = vpop.f32.mrf.mxu0
        %v2498 = vadd.f32 %v2409, %v2497
        %v2499 = vpop.f32.mrf.mxu0
        %v2500 = vadd.f32 %v2411, %v2499
        %2501 = vmatmul.bf16.gmra.mxu0 %v403
        %v2502 = vpop.f32.mrf.mxu0
        %v2503 = vadd.f32 %v2414, %v2502
        %v2504 = vpop.f32.mrf.mxu0
        %v2505 = vadd.f32 %v2416, %v2504
        %2506 = vmatmul.bf16.gmra.mxu0 %v407
        %v2507 = vpop.f32.mrf.mxu0
        %v2508 = vadd.f32 %v2419, %v2507
        %v2509 = vpop.f32.mrf.mxu0
        %v2510 = vadd.f32 %v2421, %v2509
        %2511 = vmatmul.bf16.gmra.mxu0 %v411
        %v2512 = vpop.f32.mrf.mxu0
        %v2513 = vadd.f32 %v2424, %v2512
        %v2514 = vpop.f32.mrf.mxu0
        %v2515 = vadd.f32 %v2426, %v2514
        %2516 = vmatmul.bf16.gmra.mxu0 %v415
        %v2517 = vpop.f32.mrf.mxu0
        %v2518 = vadd.f32 %v2429, %v2517
        %v2519 = vpop.f32.mrf.mxu0
        %v2520 = vadd.f32 %v2431, %v2519
        %2521 = vmatmul.bf16.gmra.mxu0 %v419
        %v2522 = vpop.f32.mrf.mxu0
        %v2523 = vadd.f32 %v2434, %v2522
        %v2524 = vpop.f32.mrf.mxu0
        %v2525 = vadd.f32 %v2436, %v2524
        %2526 = vmatmul.bf16.gmra.mxu0 %v423
        %v2527 = vpop.f32.mrf.mxu0
        %v2528 = vadd.f32 %v2439, %v2527
        %v2529 = vpop.f32.mrf.mxu0
        %v2530 = vadd.f32 %v2441, %v2529
        %2531 = vmatmul.bf16.gmra.mxu0 %v427
        %v2532 = vpop.f32.mrf.mxu0
        %v2533 = vadd.f32 %v2444, %v2532
        %v2534 = vpop.f32.mrf.mxu0
        %v2535 = vadd.f32 %v2446, %v2534
        %2536 = vmatmul.bf16.gmra.mxu0 %v431
        %v2537 = vpop.f32.mrf.mxu0
        %v2538 = vadd.f32 %v2449, %v2537
        %v2539 = vpop.f32.mrf.mxu0
        %v2540 = vadd.f32 %v2451, %v2539
        %2541 = vmatmul.bf16.gmra.mxu0 %v435
        %v2542 = vpop.f32.mrf.mxu0
        %v2543 = vadd.f32 %v2454, %v2542
        %v2544 = vpop.f32.mrf.mxu0
        %v2545 = vadd.f32 %v2456, %v2544
        %2546 = vmatmul.bf16.gmra.mxu0 %v439
        %v2547 = vpop.f32.mrf.mxu0
        %v2548 = vadd.f32 %v2459, %v2547
        %v2549 = vpop.f32.mrf.mxu0
        %v2550 = vadd.f32 %v2461, %v2549
        %2551 = vmatmul.bf16.gmra.mxu0 %v443
        %v2552 = vpop.f32.mrf.mxu0
        %v2553 = vadd.f32 %v2464, %v2552
        %v2554 = vpop.f32.mrf.mxu0
        %v2555 = vadd.f32 %v2466, %v2554
        %2556 = vmatmul.bf16.gmra.mxu0 %v447
        %v2557 = vpop.f32.mrf.mxu0
        %v2558 = vadd.f32 %v2469, %v2557
        %v2559 = vpop.f32.mrf.mxu0
        %v2560 = vadd.f32 %v2471, %v2559
        %2561 = vdwg.mxu0
        %2562 = vmatpush.bf16.msra.mxu0 %v1098
        %2563 = vmatpush.bf16.msra.mxu0 %v1094
        %2564 = vmatpush.bf16.msra.mxu0 %v1090
        %2565 = vmatpush.bf16.msra.mxu0 %v1086
        %2566 = vmatpush.bf16.msra.mxu0 %v1082
        %2567 = vmatpush.bf16.msra.mxu0 %v1078
        %2568 = vmatpush.bf16.msra.mxu0 %v1074
        %2569 = vmatpush.bf16.msra.mxu0 %v1070
        %2570 = vmatmul.bf16.gmra.mxu0 %v388
        %v2571 = vpop.f32.mrf.mxu0
        %v2572 = vadd.f32 %v2483, %v2571
        %v2573 = vpop.f32.mrf.mxu0
        %v2574 = vadd.f32 %v2485, %v2573
        %2575 = vmatmul.bf16.gmra.mxu0 %v392
        %v2576 = vpop.f32.mrf.mxu0
        %v2577 = vadd.f32 %v2488, %v2576
        %v2578 = vpop.f32.mrf.mxu0
        %v2579 = vadd.f32 %v2490, %v2578
        %2580 = vmatmul.bf16.gmra.mxu0 %v396
        %v2581 = vpop.f32.mrf.mxu0
        %v2582 = vadd.f32 %v2493, %v2581
        %v2583 = vpop.f32.mrf.mxu0
        %v2584 = vadd.f32 %v2495, %v2583
        %2585 = vmatmul.bf16.gmra.mxu0 %v400
        %v2586 = vpop.f32.mrf.mxu0
        %v2587 = vadd.f32 %v2498, %v2586
        %v2588 = vpop.f32.mrf.mxu0
        %v2589 = vadd.f32 %v2500, %v2588
        %2590 = vmatmul.bf16.gmra.mxu0 %v404
        %v2591 = vpop.f32.mrf.mxu0
        %v2592 = vadd.f32 %v2503, %v2591
        %v2593 = vpop.f32.mrf.mxu0
        %v2594 = vadd.f32 %v2505, %v2593
        %2595 = vmatmul.bf16.gmra.mxu0 %v408
        %v2596 = vpop.f32.mrf.mxu0
        %v2597 = vadd.f32 %v2508, %v2596
        %v2598 = vpop.f32.mrf.mxu0
        %v2599 = vadd.f32 %v2510, %v2598
        %2600 = vmatmul.bf16.gmra.mxu0 %v412
        %v2601 = vpop.f32.mrf.mxu0
        %v2602 = vadd.f32 %v2513, %v2601
        %v2603 = vpop.f32.mrf.mxu0
        %v2604 = vadd.f32 %v2515, %v2603
        %2605 = vmatmul.bf16.gmra.mxu0 %v416
        %v2606 = vpop.f32.mrf.mxu0
        %v2607 = vadd.f32 %v2518, %v2606
        %v2608 = vpop.f32.mrf.mxu0
        %v2609 = vadd.f32 %v2520, %v2608
        %2610 = vmatmul.bf16.gmra.mxu0 %v420
        %v2611 = vpop.f32.mrf.mxu0
        %v2612 = vadd.f32 %v2523, %v2611
        %v2613 = vpop.f32.mrf.mxu0
        %v2614 = vadd.f32 %v2525, %v2613
        %2615 = vmatmul.bf16.gmra.mxu0 %v424
        %v2616 = vpop.f32.mrf.mxu0
        %v2617 = vadd.f32 %v2528, %v2616
        %v2618 = vpop.f32.mrf.mxu0
        %v2619 = vadd.f32 %v2530, %v2618
        %2620 = vmatmul.bf16.gmra.mxu0 %v428
        %v2621 = vpop.f32.mrf.mxu0
        %v2622 = vadd.f32 %v2533, %v2621
        %v2623 = vpop.f32.mrf.mxu0
        %v2624 = vadd.f32 %v2535, %v2623
        %2625 = vmatmul.bf16.gmra.mxu0 %v432
        %v2626 = vpop.f32.mrf.mxu0
        %v2627 = vadd.f32 %v2538, %v2626
        %v2628 = vpop.f32.mrf.mxu0
        %v2629 = vadd.f32 %v2540, %v2628
        %2630 = vmatmul.bf16.gmra.mxu0 %v436
        %v2631 = vpop.f32.mrf.mxu0
        %v2632 = vadd.f32 %v2543, %v2631
        %v2633 = vpop.f32.mrf.mxu0
        %v2634 = vadd.f32 %v2545, %v2633
        %2635 = vmatmul.bf16.gmra.mxu0 %v440
        %v2636 = vpop.f32.mrf.mxu0
        %v2637 = vadd.f32 %v2548, %v2636
        %v2638 = vpop.f32.mrf.mxu0
        %v2639 = vadd.f32 %v2550, %v2638
        %2640 = vmatmul.bf16.gmra.mxu0 %v444
        %v2641 = vpop.f32.mrf.mxu0
        %v2642 = vadd.f32 %v2553, %v2641
        %v2643 = vpop.f32.mrf.mxu0
        %v2644 = vadd.f32 %v2555, %v2643
        %2645 = vmatmul.bf16.gmra.mxu0 %v448
        %v2646 = vpop.f32.mrf.mxu0
        %v2647 = vadd.f32 %v2558, %v2646
        %v2648 = vpop.f32.mrf.mxu0
        %v2649 = vadd.f32 %v2560, %v2648
        %2650 = vdwg.mxu0
        %v2651 = vmax.f32 %v1504, 0.0
        %v2652 = vmax.f32 %v1860, 0.0
        %v2653 = vmax.f32 %v2216, 0.0
        %v2654 = vmax.f32 %v2572, 0.0
        %v2655 = vmax.f32 %v1506, 0.0
        %v2656 = vmax.f32 %v1862, 0.0
        %v2657 = vmax.f32 %v2218, 0.0
        %v2658 = vmax.f32 %v2574, 0.0
        %v2659 = vmax.f32 %v1509, 0.0
        %v2660 = vmax.f32 %v1865, 0.0
        %v2661 = vmax.f32 %v2221, 0.0
        %v2662 = vmax.f32 %v2577, 0.0
        %v2663 = vmax.f32 %v1511, 0.0
        %v2664 = vmax.f32 %v1867, 0.0
        %v2665 = vmax.f32 %v2223, 0.0
        %v2666 = vmax.f32 %v2579, 0.0
        %v2667 = vmax.f32 %v1514, 0.0
        %v2668 = vmax.f32 %v1870, 0.0
        %v2669 = vmax.f32 %v2226, 0.0
        %v2670 = vmax.f32 %v2582, 0.0
        %v2671 = vmax.f32 %v1516, 0.0
        %v2672 = vmax.f32 %v1872, 0.0
        %v2673 = vmax.f32 %v2228, 0.0
        %v2674 = vmax.f32 %v2584, 0.0
        %v2675 = vmax.f32 %v1519, 0.0
        %v2676 = vmax.f32 %v1875, 0.0
        %v2677 = vmax.f32 %v2231, 0.0
        %v2678 = vmax.f32 %v2587, 0.0
        %v2679 = vmax.f32 %v1521, 0.0
        %v2680 = vmax.f32 %v1877, 0.0
        %v2681 = vmax.f32 %v2233, 0.0
        %v2682 = vmax.f32 %v2589, 0.0
        %v2683 = vmax.f32 %v1524, 0.0
        %v2684 = vmax.f32 %v1880, 0.0
        %v2685 = vmax.f32 %v2236, 0.0
        %v2686 = vmax.f32 %v2592, 0.0
        %v2687 = vmax.f32 %v1526, 0.0
        %v2688 = vmax.f32 %v1882, 0.0
        %v2689 = vmax.f32 %v2238, 0.0
        %v2690 = vmax.f32 %v2594, 0.0
        %v2691 = vmax.f32 %v1529, 0.0
        %v2692 = vmax.f32 %v1885, 0.0
        %v2693 = vmax.f32 %v2241, 0.0
        %v2694 = vmax.f32 %v2597, 0.0
        %v2695 = vmax.f32 %v1531, 0.0
        %v2696 = vmax.f32 %v1887, 0.0
        %v2697 = vmax.f32 %v2243, 0.0
        %v2698 = vmax.f32 %v2599, 0.0
        %v2699 = vmax.f32 %v1534, 0.0
        %v2700 = vmax.f32 %v1890, 0.0
        %v2701 = vmax.f32 %v2246, 0.0
        %v2702 = vmax.f32 %v2602, 0.0
        %v2703 = vmax.f32 %v1536, 0.0
        %v2704 = vmax.f32 %v1892, 0.0
        %v2705 = vmax.f32 %v2248, 0.0
        %v2706 = vmax.f32 %v2604, 0.0
        %v2707 = vmax.f32 %v1539, 0.0
        %v2708 = vmax.f32 %v1895, 0.0
        %v2709 = vmax.f32 %v2251, 0.0
        %v2710 = vmax.f32 %v2607, 0.0
        %v2711 = vmax.f32 %v1541, 0.0
        %v2712 = vmax.f32 %v1897, 0.0
        %v2713 = vmax.f32 %v2253, 0.0
        %v2714 = vmax.f32 %v2609, 0.0
        %v2715 = vmax.f32 %v1544, 0.0
        %v2716 = vmax.f32 %v1900, 0.0
        %v2717 = vmax.f32 %v2256, 0.0
        %v2718 = vmax.f32 %v2612, 0.0
        %v2719 = vmax.f32 %v1546, 0.0
        %v2720 = vmax.f32 %v1902, 0.0
        %v2721 = vmax.f32 %v2258, 0.0
        %v2722 = vmax.f32 %v2614, 0.0
        %v2723 = vmax.f32 %v1549, 0.0
        %v2724 = vmax.f32 %v1905, 0.0
        %v2725 = vmax.f32 %v2261, 0.0
        %v2726 = vmax.f32 %v2617, 0.0
        %v2727 = vmax.f32 %v1551, 0.0
        %v2728 = vmax.f32 %v1907, 0.0
        %v2729 = vmax.f32 %v2263, 0.0
        %v2730 = vmax.f32 %v2619, 0.0
        %v2731 = vmax.f32 %v1554, 0.0
        %v2732 = vmax.f32 %v1910, 0.0
        %v2733 = vmax.f32 %v2266, 0.0
        %v2734 = vmax.f32 %v2622, 0.0
        %v2735 = vmax.f32 %v1556, 0.0
        %v2736 = vmax.f32 %v1912, 0.0
        %v2737 = vmax.f32 %v2268, 0.0
        %v2738 = vmax.f32 %v2624, 0.0
        %v2739 = vmax.f32 %v1559, 0.0
        %v2740 = vmax.f32 %v1915, 0.0
        %v2741 = vmax.f32 %v2271, 0.0
        %v2742 = vmax.f32 %v2627, 0.0
        %v2743 = vmax.f32 %v1561, 0.0
        %v2744 = vmax.f32 %v1917, 0.0
        %v2745 = vmax.f32 %v2273, 0.0
        %v2746 = vmax.f32 %v2629, 0.0
        %v2747 = vmax.f32 %v1564, 0.0
        %v2748 = vmax.f32 %v1920, 0.0
        %v2749 = vmax.f32 %v2276, 0.0
        %v2750 = vmax.f32 %v2632, 0.0
        %v2751 = vmax.f32 %v1566, 0.0
        %v2752 = vmax.f32 %v1922, 0.0
        %v2753 = vmax.f32 %v2278, 0.0
        %v2754 = vmax.f32 %v2634, 0.0
        %v2755 = vmax.f32 %v1569, 0.0
        %v2756 = vmax.f32 %v1925, 0.0
        %v2757 = vmax.f32 %v2281, 0.0
        %v2758 = vmax.f32 %v2637, 0.0
        %v2759 = vmax.f32 %v1571, 0.0
        %v2760 = vmax.f32 %v1927, 0.0
        %v2761 = vmax.f32 %v2283, 0.0
        %v2762 = vmax.f32 %v2639, 0.0
        %v2763 = vmax.f32 %v1574, 0.0
        %v2764 = vmax.f32 %v1930, 0.0
        %v2765 = vmax.f32 %v2286, 0.0
        %v2766 = vmax.f32 %v2642, 0.0
        %v2767 = vmax.f32 %v1576, 0.0
        %v2768 = vmax.f32 %v1932, 0.0
        %v2769 = vmax.f32 %v2288, 0.0
        %v2770 = vmax.f32 %v2644, 0.0
        %v2771 = vmax.f32 %v1579, 0.0
        %v2772 = vmax.f32 %v1935, 0.0
        %v2773 = vmax.f32 %v2291, 0.0
        %v2774 = vmax.f32 %v2647, 0.0
        %v2775 = vmax.f32 %v1581, 0.0
        %v2776 = vmax.f32 %v1937, 0.0
        %v2777 = vmax.f32 %v2293, 0.0
        %v2778 = vmax.f32 %v2649, 0.0
        %2779 = vst [vmem:[%s251] sm:$0xff] %v2651
        %2780 = vst [vmem:[%s251 + $0x8] sm:$0xff] %v2652
        %2781 = vst [vmem:[%s251 + $0x10] sm:$0xff] %v2653
        %2782 = vst [vmem:[%s251 + $0x18] sm:$0xff] %v2654
        %2783 = vst [vmem:[%s251 + $0x20] sm:$0xff] %v2655
        %2784 = vst [vmem:[%s251 + $0x28] sm:$0xff] %v2656
        %2785 = vst [vmem:[%s251 + $0x30] sm:$0xff] %v2657
        %2786 = vst [vmem:[%s251 + $0x38] sm:$0xff] %v2658
        %2787 = vst [vmem:[%s251 + $0x40] sm:$0xff] %v2659
        %2788 = vst [vmem:[%s251 + $0x48] sm:$0xff] %v2660
        %2789 = vst [vmem:[%s251 + $0x50] sm:$0xff] %v2661
        %2790 = vst [vmem:[%s251 + $0x58] sm:$0xff] %v2662
        %2791 = vst [vmem:[%s251 + $0x60] sm:$0xff] %v2663
        %2792 = vst [vmem:[%s251 + $0x68] sm:$0xff] %v2664
        %2793 = vst [vmem:[%s251 + $0x70] sm:$0xff] %v2665
        %2794 = vst [vmem:[%s251 + $0x78] sm:$0xff] %v2666
        %2795 = vst [vmem:[%s251 + $0x80] sm:$0xff] %v2667
        %2796 = vst [vmem:[%s251 + $0x88] sm:$0xff] %v2668
        %2797 = vst [vmem:[%s251 + $0x90] sm:$0xff] %v2669
        %2798 = vst [vmem:[%s251 + $0x98] sm:$0xff] %v2670
        %2799 = vst [vmem:[%s251 + $0xa0] sm:$0xff] %v2671
        %2800 = vst [vmem:[%s251 + $0xa8] sm:$0xff] %v2672
        %2801 = vst [vmem:[%s251 + $0xb0] sm:$0xff] %v2673
        %2802 = vst [vmem:[%s251 + $0xb8] sm:$0xff] %v2674
        %2803 = vst [vmem:[%s251 + $0xc0] sm:$0xff] %v2675
        %2804 = vst [vmem:[%s251 + $0xc8] sm:$0xff] %v2676
        %2805 = vst [vmem:[%s251 + $0xd0] sm:$0xff] %v2677
        %2806 = vst [vmem:[%s251 + $0xd8] sm:$0xff] %v2678
        %2807 = vst [vmem:[%s251 + $0xe0] sm:$0xff] %v2679
        %2808 = vst [vmem:[%s251 + $0xe8] sm:$0xff] %v2680
        %2809 = vst [vmem:[%s251 + $0xf0] sm:$0xff] %v2681
        %2810 = vst [vmem:[%s251 + $0xf8] sm:$0xff] %v2682
        %2811 = vst [vmem:[%s251 + $0x100] sm:$0xff] %v2683
        %2812 = vst [vmem:[%s251 + $0x108] sm:$0xff] %v2684
        %2813 = vst [vmem:[%s251 + $0x110] sm:$0xff] %v2685
        %2814 = vst [vmem:[%s251 + $0x118] sm:$0xff] %v2686
        %2815 = vst [vmem:[%s251 + $0x120] sm:$0xff] %v2687
        %2816 = vst [vmem:[%s251 + $0x128] sm:$0xff] %v2688
        %2817 = vst [vmem:[%s251 + $0x130] sm:$0xff] %v2689
        %2818 = vst [vmem:[%s251 + $0x138] sm:$0xff] %v2690
        %2819 = vst [vmem:[%s251 + $0x140] sm:$0xff] %v2691
        %2820 = vst [vmem:[%s251 + $0x148] sm:$0xff] %v2692
        %2821 = vst [vmem:[%s251 + $0x150] sm:$0xff] %v2693
        %2822 = vst [vmem:[%s251 + $0x158] sm:$0xff] %v2694
        %2823 = vst [vmem:[%s251 + $0x160] sm:$0xff] %v2695
        %2824 = vst [vmem:[%s251 + $0x168] sm:$0xff] %v2696
        %2825 = vst [vmem:[%s251 + $0x170] sm:$0xff] %v2697
        %2826 = vst [vmem:[%s251 + $0x178] sm:$0xff] %v2698
        %2827 = vst [vmem:[%s251 + $0x180] sm:$0xff] %v2699
        %2828 = vst [vmem:[%s251 + $0x188] sm:$0xff] %v2700
        %2829 = vst [vmem:[%s251 + $0x190] sm:$0xff] %v2701
        %2830 = vst [vmem:[%s251 + $0x198] sm:$0xff] %v2702
        %2831 = vst [vmem:[%s251 + $0x1a0] sm:$0xff] %v2703
        %2832 = vst [vmem:[%s251 + $0x1a8] sm:$0xff] %v2704
        %2833 = vst [vmem:[%s251 + $0x1b0] sm:$0xff] %v2705
        %2834 = vst [vmem:[%s251 + $0x1b8] sm:$0xff] %v2706
        %2835 = vst [vmem:[%s251 + $0x1c0] sm:$0xff] %v2707
        %2836 = vst [vmem:[%s251 + $0x1c8] sm:$0xff] %v2708
        %2837 = vst [vmem:[%s251 + $0x1d0] sm:$0xff] %v2709
        %2838 = vst [vmem:[%s251 + $0x1d8] sm:$0xff] %v2710
        %2839 = vst [vmem:[%s251 + $0x1e0] sm:$0xff] %v2711
        %2840 = vst [vmem:[%s251 + $0x1e8] sm:$0xff] %v2712
        %2841 = vst [vmem:[%s251 + $0x1f0] sm:$0xff] %v2713
        %2842 = vst [vmem:[%s251 + $0x1f8] sm:$0xff] %v2714
        %2843 = vst [vmem:[%s251 + $0x200] sm:$0xff] %v2715
        %2844 = vst [vmem:[%s251 + $0x208] sm:$0xff] %v2716
        %2845 = vst [vmem:[%s251 + $0x210] sm:$0xff] %v2717
        %2846 = vst [vmem:[%s251 + $0x218] sm:$0xff] %v2718
        %2847 = vst [vmem:[%s251 + $0x220] sm:$0xff] %v2719
        %2848 = vst [vmem:[%s251 + $0x228] sm:$0xff] %v2720
        %2849 = vst [vmem:[%s251 + $0x230] sm:$0xff] %v2721
        %2850 = vst [vmem:[%s251 + $0x238] sm:$0xff] %v2722
        %2851 = vst [vmem:[%s251 + $0x240] sm:$0xff] %v2723
        %2852 = vst [vmem:[%s251 + $0x248] sm:$0xff] %v2724
        %2853 = vst [vmem:[%s251 + $0x250] sm:$0xff] %v2725
        %2854 = vst [vmem:[%s251 + $0x258] sm:$0xff] %v2726
        %2855 = vst [vmem:[%s251 + $0x260] sm:$0xff] %v2727
        %2856 = vst [vmem:[%s251 + $0x268] sm:$0xff] %v2728
        %2857 = vst [vmem:[%s251 + $0x270] sm:$0xff] %v2729
        %2858 = vst [vmem:[%s251 + $0x278] sm:$0xff] %v2730
        %2859 = vst [vmem:[%s251 + $0x280] sm:$0xff] %v2731
        %2860 = vst [vmem:[%s251 + $0x288] sm:$0xff] %v2732
        %2861 = vst [vmem:[%s251 + $0x290] sm:$0xff] %v2733
        %2862 = vst [vmem:[%s251 + $0x298] sm:$0xff] %v2734
        %2863 = vst [vmem:[%s251 + $0x2a0] sm:$0xff] %v2735
        %2864 = vst [vmem:[%s251 + $0x2a8] sm:$0xff] %v2736
        %2865 = vst [vmem:[%s251 + $0x2b0] sm:$0xff] %v2737
        %2866 = vst [vmem:[%s251 + $0x2b8] sm:$0xff] %v2738
        %2867 = vst [vmem:[%s251 + $0x2c0] sm:$0xff] %v2739
        %2868 = vst [vmem:[%s251 + $0x2c8] sm:$0xff] %v2740
        %2869 = vst [vmem:[%s251 + $0x2d0] sm:$0xff] %v2741
        %2870 = vst [vmem:[%s251 + $0x2d8] sm:$0xff] %v2742
        %2871 = vst [vmem:[%s251 + $0x2e0] sm:$0xff] %v2743
        %2872 = vst [vmem:[%s251 + $0x2e8] sm:$0xff] %v2744
        %2873 = vst [vmem:[%s251 + $0x2f0] sm:$0xff] %v2745
        %2874 = vst [vmem:[%s251 + $0x2f8] sm:$0xff] %v2746
        %2875 = vst [vmem:[%s251 + $0x300] sm:$0xff] %v2747
        %2876 = vst [vmem:[%s251 + $0x308] sm:$0xff] %v2748
        %2877 = vst [vmem:[%s251 + $0x310] sm:$0xff] %v2749
        %2878 = vst [vmem:[%s251 + $0x318] sm:$0xff] %v2750
        %2879 = vst [vmem:[%s251 + $0x320] sm:$0xff] %v2751
        %2880 = vst [vmem:[%s251 + $0x328] sm:$0xff] %v2752
        %2881 = vst [vmem:[%s251 + $0x330] sm:$0xff] %v2753
        %2882 = vst [vmem:[%s251 + $0x338] sm:$0xff] %v2754
        %2883 = vst [vmem:[%s251 + $0x340] sm:$0xff] %v2755
        %2884 = vst [vmem:[%s251 + $0x348] sm:$0xff] %v2756
        %2885 = vst [vmem:[%s251 + $0x350] sm:$0xff] %v2757
        %2886 = vst [vmem:[%s251 + $0x358] sm:$0xff] %v2758
        %2887 = vst [vmem:[%s251 + $0x360] sm:$0xff] %v2759
        %2888 = vst [vmem:[%s251 + $0x368] sm:$0xff] %v2760
        %2889 = vst [vmem:[%s251 + $0x370] sm:$0xff] %v2761
        %2890 = vst [vmem:[%s251 + $0x378] sm:$0xff] %v2762
        %2891 = vst [vmem:[%s251 + $0x380] sm:$0xff] %v2763
        %2892 = vst [vmem:[%s251 + $0x388] sm:$0xff] %v2764
        %2893 = vst [vmem:[%s251 + $0x390] sm:$0xff] %v2765
        %2894 = vst [vmem:[%s251 + $0x398] sm:$0xff] %v2766
        %2895 = vst [vmem:[%s251 + $0x3a0] sm:$0xff] %v2767
        %2896 = vst [vmem:[%s251 + $0x3a8] sm:$0xff] %v2768
        %2897 = vst [vmem:[%s251 + $0x3b0] sm:$0xff] %v2769
        %2898 = vst [vmem:[%s251 + $0x3b8] sm:$0xff] %v2770
        %2899 = vst [vmem:[%s251 + $0x3c0] sm:$0xff] %v2771
        %2900 = vst [vmem:[%s251 + $0x3c8] sm:$0xff] %v2772
        %2901 = vst [vmem:[%s251 + $0x3d0] sm:$0xff] %v2773
        %2902 = vst [vmem:[%s251 + $0x3d8] sm:$0xff] %v2774
        %2903 = vst [vmem:[%s251 + $0x3e0] sm:$0xff] %v2775
        %2904 = vst [vmem:[%s251 + $0x3e8] sm:$0xff] %v2776
        %2905 = vst [vmem:[%s251 + $0x3f0] sm:$0xff] %v2777
        %2906 = vst [vmem:[%s251 + $0x3f8] sm:$0xff] %v2778
        %s2907 = sand.u32 %s121, 1
        %s2908 = scalar_lea.sflag [#allocation4], %s2907
        %s2909 = sand.u32 %s121, 1
        %s2910 = smul.addr %s2909, 1024
        %s2911 = scalar_lea.vmem [#allocation8], %s2910
        // Predicated region
        $region45: #{tpu_custom_call.1} parent=31 // pred_check
          %p2912 = pneg %p131
        $region46: #{tpu_custom_call.1} parent=31 // pred_check_branch
          %2914 = sbr.rel (%p2912) target = $region48
        $region47: #{tpu_custom_call.1} parent=31 // pred_region
          %s2915 = smul.u32 32, %s26
          %s2916 = smul.u32 4, %s25
          %2918 = vsyncadd %s2908, 0
          %s2919 = smul.addr %s2915, 4
          %s2920 = sadd.s32 %s2916, %s2919
          %s2921 = smul.addr %s2920, 8
          %s2922 = scalar_lea.hbm %s3, %s2921
          %s2923 = sshll.u32 %s2911, 4
          %s2924 = int_to_ptr.vmem [resolvable:$true] %s2923
          %s2925 = sshll.u32 %s2922, 4
          %s2926 = int_to_ptr.hbm [resolvable:$true] %s2925
          %2931 = dma.vmem_to_hbm [thread:$0]  %s2924, 16384, %s2926, %s2908, 512, 512, 32
        $region48: #{tpu_custom_call.1} parent=31 // pred_fallthru
          _
      $region32: #{tpu_custom_call.1} parent=5 // pred_fallthru
        _
      %p2932 = scmp.le.s32.totalorder 2, %s16
      // Predicated region
      $region49: #{tpu_custom_call.1} parent=5 // pred_check
        %p2933 = pneg %p2932
      $region50: #{tpu_custom_call.1} parent=5 // pred_check_branch
        %2935 = sbr.rel (%p2933) target = $region52
      $region51: #{tpu_custom_call.1} parent=5 // pred_region
        %s2936 = ssub.s32 %s16, 2
        // Predicated region
        $region53: #{tpu_custom_call.1} parent=51 // pred_check
          %p2937 = pneg %p137
        $region54: #{tpu_custom_call.1} parent=51 // pred_check_branch
          %2939 = sbr.rel (%p2937) target = $region56
        $region55: #{tpu_custom_call.1} parent=51 // pred_region
          %s2940 = sand.u32 %s122, 1
          %s2941 = scalar_lea.sflag [#allocation4], %s2940
          %s2942 = sand.u32 %s122, 1
          %s2943 = smul.addr %s2942, 1024
          %s2944 = scalar_lea.vmem [#allocation8], %s2943
          %2946 = dma.done %s2941, 16384
        $region56: #{tpu_custom_call.1} parent=51 // pred_fallthru
          _
      $region52: #{tpu_custom_call.1} parent=5 // pred_fallthru
        _
    $region6: #{tpu_custom_call.1} parent=1 // loop_footer
      %s20 = sadd.s32 1, %s16
    $region7: #{tpu_custom_call.1} parent=1 // loop_footer_branch
      %15 = sbr.rel target = $region3
    $region8: #{tpu_custom_call.1} parent=1 // loop_exit
      _
    %2947 = vsyncpa [#allocation3], 1
    %s2948 = scalar_lea.sflag [#allocation3], 1
    %2949 = vsyncpa %s2948, 1
    %2950 = vsyncpa [#allocation6], 1
    %2951 = vsyncpa [#allocation4], 1
    %s2952 = scalar_lea.sflag [#allocation4], 1
    %2953 = vsyncpa %s2952, 1

</llo_original>
